<compile_context>
chip_gen: v7x
topology: tpu7x:2x2x1
jax: 0.10.0
libtpu: 0.0.40
codegen_flags: <defaults>
</compile_context>

<pallas_src>
import math

import jax
import jax.numpy as jnp
from jax.experimental import pallas as pl
from jax.experimental.pallas import tpu as pltpu

ADCBITNUMBER = 5
POINTNUMS = 2 ** ADCBITNUMBER            # 32 (sigmoid ADC points)
POINTNUMT = 2 ** (ADCBITNUMBER - 1)      # 16 (tanh ADC points)
NOISE_STD = 5.0
LSTM_WB_MAX = 2.0
G_RATIO_LSTM = 150.0 / LSTM_WB_MAX

SIG_SCALE = 1.0 / (POINTNUMS + 2)              # 1/34
TANH_SCALE = 1.0 / ((POINTNUMS + 2) / 2)       # 2/34


# ----------------------------------------------------------------------------
# Ramp generation (glue, plain JAX) -- mirrors ramp_*_generation_noise()
# ----------------------------------------------------------------------------
def _round3(x):
    return jnp.round(x * 1000.0) / 1000.0


def _ramp_from_deltas(v, dg):
    dV = v[1:] - v[:-1]                                   # (len(v)-1,)
    num = _round3(dV)
    den = jnp.min(num)
    cell = num / den
    g = (150.0 / jnp.max(cell)) * cell
    dvt = (g + dg) * (jnp.max(dV) / 150.0)
    middle = dV.shape[0] // 2
    v0 = -jnp.sum(dvt[:middle])
    return jnp.concatenate([v0[None], v0 + jnp.cumsum(dvt)])   # (len(v),)


def ramp_sigmoid_generation_noise(dg_s):
    # t = 1/34, 2/34, ..., 33/34   (33 points)
    t = jnp.arange(1, POINTNUMS + 2, dtype=jnp.float32) / (POINTNUMS + 2)
    v = jnp.log(t / (1.0 - t))
    return _ramp_from_deltas(v, dg_s)


def ramp_tanh_generation_noise(dg_t):
    # t = -16/17, ..., 16/17   (33 points)
    t = (jnp.arange(2 * POINTNUMT + 1, dtype=jnp.float32) - POINTNUMT) / (POINTNUMT + 1)
    v = 0.5 * jnp.log((1.0 + t) / (1.0 - t))
    return _ramp_from_deltas(v, dg_t)


# ----------------------------------------------------------------------------
# Pallas kernel: recurrent part only (gate ADC + cell update + projection)
# ----------------------------------------------------------------------------
def _lstm_kernel(sig_ref, tanh_ref,                  # SMEM threshold vectors (31,)
                 gx_ref, u_ref, pw_ref, pb_ref,      # VMEM inputs
                 hseq_ref, hout_ref, cout_ref,       # outputs
                 h_scr, c_scr):                      # VMEM scratch carries
    t = pl.program_id(0)

    @pl.when(t == 0)
    def _():
        h_scr[...] = jnp.zeros_like(h_scr)
        c_scr[...] = jnp.zeros_like(c_scr)

    Hp = c_scr.shape[1]

    # gates = (x @ W + bias)_t  +  h @ U     -- gate order [i, f, o, g]
    gates = gx_ref[0] + jnp.dot(h_scr[...].astype(u_ref.dtype), u_ref[...],
                                preferred_element_type=jnp.float32)

    def adc_count(z, thr_ref):
        # counter = sum_i (z >= threshold_i), as in ADCSigmoidNoise/ADCTanhNoise
        cnt = jnp.zeros_like(z)
        for i in range(POINTNUMS - 1):
            cnt += (z >= thr_ref[i]).astype(jnp.float32)
        return cnt

    # One fused sigmoid-ADC pass over the contiguous [i|f|o] slab, one tanh pass.
    sig = adc_count(gates[:, :3 * Hp], sig_ref) * SIG_SCALE
    g_t = adc_count(gates[:, 3 * Hp:], tanh_ref) * TANH_SCALE - 1.0

    i_t = sig[:, 0 * Hp:1 * Hp]
    f_t = sig[:, 1 * Hp:2 * Hp]
    o_t = sig[:, 2 * Hp:3 * Hp]

    c_new = f_t * c_scr[...] + i_t * g_t
    h_pre = o_t * jnp.tanh(c_new)
    h_new = jnp.dot(h_pre.astype(pw_ref.dtype), pw_ref[...],
                    preferred_element_type=jnp.float32) + pb_ref[...]   # projection

    c_scr[...] = c_new
    h_scr[...] = h_new
    hseq_ref[0] = h_new

    @pl.when(t == pl.num_programs(0) - 1)
    def _():
        hout_ref[...] = h_new
        cout_ref[...] = c_new


# ----------------------------------------------------------------------------
# Wrapper (noise injection, padding/reorder, pallas_call, hoisted head)
# ----------------------------------------------------------------------------
def _round_up(n, m):
    return ((n + m - 1) // m) * m


def _pad_last(a, target):
    pad = target - a.shape[-1]
    if pad == 0:
        return a
    return jnp.pad(a, [(0, 0)] * (a.ndim - 1) + [(0, pad)])


def _reorder_pad_gate_cols(mat, H, Hp):
    """(..., 4H) in torch gate order [i, f, g, o] -> (..., 4Hp) in order [i, f, o, g]."""
    i = mat[..., 0 * H:1 * H]
    f = mat[..., 1 * H:2 * H]
    g = mat[..., 2 * H:3 * H]
    o = mat[..., 3 * H:4 * H]
    return jnp.concatenate([_pad_last(i, Hp), _pad_last(f, Hp),
                            _pad_last(o, Hp), _pad_last(g, Hp)], axis=-1)


def ptb_lstm_forward(x, params, dg_s, dg_t):
    """x: (batch, seq, input_size) float32.  Returns (output, (h_T, c_T))."""
    W, U, b = params["W"], params["U"], params["bias"]
    pW, pb = params["proj_w"], params["proj_b"]          # proj_w: (proj, hidden)
    lW, lb = params["lin_w"], params["lin_b"]            # lin_w: (classes, proj)
    delg = params["delg"]                                # (inp + proj + 1, 4*hidden)

    bs, seq, inp = x.shape
    H = W.shape[1] // 4
    proj = U.shape[0]
    classes = lW.shape[0]

    bs_p = _round_up(max(bs, 8), 8)          # >= 8 sublanes
    Hp = _round_up(H, 128)                   # 128-lane-aligned gate blocks
    proj_p = _round_up(proj, 128)

    def clamp(w):
        return jnp.where(jnp.abs(w) >= LSTM_WB_MAX, LSTM_WB_MAX * jnp.sign(w), w)

    # Weight / bias noise injection (LSTM_delg / g_ratio + clamped params).
    # TODO(synk): nn.Dropout(p=0.01) on W_mu/U_mu/bias_mu treated as identity (eval mode).
    W_mu = delg[:inp, :] / G_RATIO_LSTM + clamp(W)                 # (inp, 4H)
    U_mu = delg[inp:inp + proj, :] / G_RATIO_LSTM + clamp(U)       # (proj, 4H)
    bias_mu = delg[inp + proj, :] / G_RATIO_LSTM + clamp(b)        # (4H,)

    # Gate reorder + 128-lane padding (zero-padded columns never affect real outputs).
    W_p = _reorder_pad_gate_cols(W_mu, H, Hp)                                # (inp, 4Hp)
    U_p = _reorder_pad_gate_cols(U_mu, H, Hp)                                # (proj, 4Hp)
    U_p = jnp.pad(U_p, ((0, proj_p - proj), (0, 0)))                         # (proj_p, 4Hp)
    bias_p = _reorder_pad_gate_cols(bias_mu.reshape(1, 4 * H), H, Hp)        # (1, 4Hp)

    pWT = jnp.pad(jnp.transpose(pW), ((0, Hp - H), (0, proj_p - proj)))      # (Hp, proj_p)
    pb_p = _pad_last(pb.reshape(1, proj), proj_p)                            # (1, proj_p)

    # ADC ramps (thresholds); only the first POINTNUMS-1 entries are used.
    sig_thr = ramp_sigmoid_generation_noise(dg_s)[:POINTNUMS - 1]
    tanh_thr = ramp_tanh_generation_noise(dg_t)[:POINTNUMS - 1]

    # (seq, bs_p, inp), zero-padded batch rows.
    x_sbi = jnp.transpose(x, (1, 0, 2)).astype(jnp.float32)
    x_sbi = jnp.pad(x_sbi, ((0, 0), (0, bs_p - bs), (0, 0)))

    # Hoisted input-side matmul: one MXU-friendly (seq*bs_p, inp) @ (inp, 4Hp).
    gates_x = (jnp.dot(x_sbi.reshape(seq * bs_p, inp).astype(jnp.bfloat16),
                       W_p.astype(jnp.bfloat16),
                       preferred_element_type=jnp.float32)
               .reshape(seq, bs_p, 4 * Hp) + bias_p)

    out_shapes = (
        jax.ShapeDtypeStruct((seq, bs_p, proj_p), jnp.float32),   # h per step
        jax.ShapeDtypeStruct((bs_p, proj_p), jnp.float32),        # final h
        jax.ShapeDtypeStruct((bs_p, Hp), jnp.float32),            # final c
    )
    in_specs = [
        pl.BlockSpec(memory_space=pltpu.MemorySpace.SMEM),        # sigmoid thresholds
        pl.BlockSpec(memory_space=pltpu.MemorySpace.SMEM),        # tanh thresholds
        pl.BlockSpec((1, bs_p, 4 * Hp), lambda t: (t, 0, 0)),     # gates_x slice
        pl.BlockSpec((proj_p, 4 * Hp), lambda t: (0, 0)),         # U (bf16, resident)
        pl.BlockSpec((Hp, proj_p), lambda t: (0, 0)),             # proj weight^T (bf16)
        pl.BlockSpec((1, proj_p), lambda t: (0, 0)),              # proj bias
    ]
    out_specs = (
        pl.BlockSpec((1, bs_p, proj_p), lambda t: (t, 0, 0)),
        pl.BlockSpec((bs_p, proj_p), lambda t: (0, 0)),
        pl.BlockSpec((bs_p, Hp), lambda t: (0, 0)),
    )
    scratch = [
        pltpu.VMEM((bs_p, proj_p), jnp.float32),   # h carry
        pltpu.VMEM((bs_p, Hp), jnp.float32),       # c carry
    ]

    h_seq_p, h_fin_p, c_fin_p = pl.pallas_call(
        _lstm_kernel,
        out_shape=out_shapes,
        grid=(seq,),
        in_specs=in_specs,
        out_specs=out_specs,
        scratch_shapes=scratch,
        compiler_params=pltpu.CompilerParams(
            dimension_semantics=("arbitrary",),
            vmem_limit_bytes=64 * 1024 * 1024),
    )(
        sig_thr, tanh_thr, gates_x,
        U_p.astype(jnp.bfloat16), pWT.astype(jnp.bfloat16), pb_p,
    )

    # Classifier head hoisted out of the recurrence: one batched matmul over seq*bs.
    h_seq = h_seq_p[:, :bs, :proj]                                    # (seq, bs, proj)
    logits = (jnp.dot(h_seq.reshape(seq * bs, proj), jnp.transpose(lW),
                      preferred_element_type=jnp.float32)
              .reshape(seq, bs, classes) + lb)
    output = jnp.transpose(logits, (1, 0, 2))                         # (bs, seq, classes)

    h_fin = h_fin_p[:bs, :proj]
    c_fin = c_fin_p[:bs, :H]
    return output, (h_fin, c_fin)


# ----------------------------------------------------------------------------
if __name__ == "__main__":
    key = jax.random.PRNGKey(0)
    bs, seq, inp, H, proj, classes = 2, 8, 16, 32, 16, 10

    ks = jax.random.split(key, 11)
    stdv = 1.0 / math.sqrt(H)
    lstdv = 1.0 / math.sqrt(proj)

    params = {
        "W": jax.random.uniform(ks[0], (inp, 4 * H), jnp.float32, -stdv, stdv),
        "U": jax.random.uniform(ks[1], (proj, 4 * H), jnp.float32, -stdv, stdv),
        "bias": jax.random.uniform(ks[2], (4 * H,), jnp.float32, -stdv, stdv),
        "proj_w": jax.random.uniform(ks[3], (proj, H), jnp.float32, -stdv, stdv),
        "proj_b": jax.random.uniform(ks[4], (proj,), jnp.float32, -stdv, stdv),
        "lin_w": jax.random.uniform(ks[5], (classes, proj), jnp.float32, -lstdv, lstdv),
        "lin_b": jax.random.uniform(ks[6], (classes,), jnp.float32, -lstdv, lstdv),
        # conductance-variation noise matrix (generalization of (633, 8064) LSTM_delg)
        "delg": NOISE_STD * jax.random.normal(ks[7], (inp + proj + 1, 4 * H), jnp.float32),
    }

    x = jax.random.normal(ks[8], (bs, seq, inp), jnp.float32)
    dg_s = 0.5 * jax.random.normal(ks[9], (POINTNUMS,), jnp.float32)   # Δg_s (len(Delta_V)=32)
    dg_t = 0.5 * jax.random.normal(ks[10], (POINTNUMS,), jnp.float32)  # Δg_t

    output, (h_t, c_t) = jax.jit(ptb_lstm_forward)(x, params, dg_s, dg_t)
    jax.block_until_ready((output, h_t, c_t))

    assert output.shape == (bs, seq, classes)
    assert h_t.shape == (bs, proj) and c_t.shape == (bs, H)
    assert bool(jnp.all(jnp.isfinite(output)))
    print("KERNEL_OK")
</pallas_src>

<mosaic_0001>
module attributes {stable_mosaic.version = 11 : i64} {
  func.func @_lstm_kernel(%arg0: i32, %arg1: memref<31xf32, #tpu.memory_space<smem>>, %arg2: memref<31xf32, #tpu.memory_space<smem>>, %arg3: memref<1x8x512xf32, #tpu.memory_space<vmem>>, %arg4: memref<128x512xbf16, #tpu.memory_space<vmem>>, %arg5: memref<128x128xbf16, #tpu.memory_space<vmem>>, %arg6: memref<1x128xf32, #tpu.memory_space<vmem>>, %arg7: memref<1x8x128xf32, #tpu.memory_space<vmem>>, %arg8: memref<8x128xf32, #tpu.memory_space<vmem>>, %arg9: memref<8x128xf32, #tpu.memory_space<vmem>>, %arg10: memref<8x128xf32, #tpu.memory_space<vmem>>, %arg11: memref<8x128xf32, #tpu.memory_space<vmem>>) attributes {dimension_semantics = [#tpu.dimension_semantics<arbitrary>], iteration_bounds = array<i64: 8>, scalar_prefetch = 0 : i64, scratch_operands = 2 : i64, tpu.core_type = #tpu.core_type<tc>, window_params = [{transform_indices = @transform_0, window_bounds = array<i64: 31>}, {transform_indices = @transform_1, window_bounds = array<i64: 31>}, {transform_indices = @transform_2, window_bounds = array<i64: 1, 8, 512>}, {pipeline_mode = #tpu.pipeline_mode<synchronous>, transform_indices = @transform_3, window_bounds = array<i64: 128, 512>}, {pipeline_mode = #tpu.pipeline_mode<synchronous>, transform_indices = @transform_4, window_bounds = array<i64: 128, 128>}, {pipeline_mode = #tpu.pipeline_mode<synchronous>, transform_indices = @transform_5, window_bounds = array<i64: 1, 128>}, {transform_indices = @transform_6, window_bounds = array<i64: 1, 8, 128>}, {pipeline_mode = #tpu.pipeline_mode<synchronous>, transform_indices = @transform_7, window_bounds = array<i64: 8, 128>}, {pipeline_mode = #tpu.pipeline_mode<synchronous>, transform_indices = @transform_8, window_bounds = array<i64: 8, 128>}]} {
    %c0_i32 = arith.constant 0 : i32
    %0 = arith.cmpi eq, %arg0, %c0_i32 : i32
    %1 = arith.extui %0 : i1 to i32
    %c0_i32_0 = arith.constant 0 : i32
    %2 = arith.cmpi ne, %1, %c0_i32_0 : i32
    scf.if %2 {
      %cst_59 = arith.constant 0.000000e+00 : f32
      %415 = vector.broadcast %cst_59 : f32 to vector<8x128xf32>
      %c0_60 = arith.constant 0 : index
      %c0_61 = arith.constant 0 : index
      %416 = vector.load %arg10[%c0_60, %c0_61] : memref<8x128xf32, #tpu.memory_space<vmem>>, vector<8x128xf32>
      tpu.vector_store %arg10[%c0_60, %c0_61], %415 {strides = array<i32>} : memref<8x128xf32, #tpu.memory_space<vmem>>, vector<8x128xf32>,
      %cst_62 = arith.constant 0.000000e+00 : f32
      %417 = vector.broadcast %cst_62 : f32 to vector<8x128xf32>
      %c0_63 = arith.constant 0 : index
      %c0_64 = arith.constant 0 : index
      %418 = vector.load %arg11[%c0_63, %c0_64] : memref<8x128xf32, #tpu.memory_space<vmem>>, vector<8x128xf32>
      tpu.vector_store %arg11[%c0_63, %c0_64], %417 {strides = array<i32>} : memref<8x128xf32, #tpu.memory_space<vmem>>, vector<8x128xf32>,
    } else {
    }
    %c0 = arith.constant 0 : index
    %c0_1 = arith.constant 0 : index
    %c0_2 = arith.constant 0 : index
    %3 = vector.load %arg3[%c0, %c0_1, %c0_2] : memref<1x8x512xf32, #tpu.memory_space<vmem>>, vector<1x8x512xf32>
    %4 = vector.shape_cast %3 : vector<1x8x512xf32> to vector<8x512xf32>
    %c0_3 = arith.constant 0 : index
    %c0_4 = arith.constant 0 : index
    %5 = vector.load %arg10[%c0_3, %c0_4] : memref<8x128xf32, #tpu.memory_space<vmem>>, vector<8x128xf32>
    %6 = arith.truncf %5 : vector<8x128xf32> to vector<8x128xbf16>
    %c0_5 = arith.constant 0 : index
    %c0_6 = arith.constant 0 : index
    %7 = vector.load %arg4[%c0_5, %c0_6] : memref<128x512xbf16, #tpu.memory_space<vmem>>, vector<128x512xbf16>
    %cst = arith.constant dense<0.000000e+00> : vector<8x512xf32>
    %8 = tpu.matmul %6, %7, %cst {dimension_numbers = #tpu.dot_dimension_numbers<[1], [0], [0], [1], [0, 0, 1, 1], [], []>} : vector<8x128xbf16>, vector<128x512xbf16>, vector<8x512xf32> -> vector<8x512xf32>
    %9 = arith.addf %4, %8 : vector<8x512xf32>
    %10 = vector.extract_strided_slice %9 {offsets = [0, 0], sizes = [8, 384], strides = [1, 1]} : vector<8x512xf32> to vector<8x384xf32>
    %cst_7 = arith.constant 0.000000e+00 : f32
    %11 = vector.broadcast %cst_7 : f32 to vector<8x384xf32>
    %c0_8 = arith.constant 0 : index
    %12 = memref.load %arg1[%c0_8] : memref<31xf32, #tpu.memory_space<smem>>
    %13 = vector.broadcast %12 : f32 to vector<8x384xf32>
    %14 = arith.cmpf oge, %10, %13 : vector<8x384xf32>
    %15 = arith.extui %14 : vector<8x384xi1> to vector<8x384xi32>
    %16 = arith.sitofp %15 : vector<8x384xi32> to vector<8x384xf32>
    %17 = arith.addf %11, %16 : vector<8x384xf32>
    %c1 = arith.constant 1 : index
    %18 = memref.load %arg1[%c1] : memref<31xf32, #tpu.memory_space<smem>>
    %19 = vector.broadcast %18 : f32 to vector<8x384xf32>
    %20 = arith.cmpf oge, %10, %19 : vector<8x384xf32>
    %21 = arith.extui %20 : vector<8x384xi1> to vector<8x384xi32>
    %22 = arith.sitofp %21 : vector<8x384xi32> to vector<8x384xf32>
    %23 = arith.addf %17, %22 : vector<8x384xf32>
    %c2 = arith.constant 2 : index
    %24 = memref.load %arg1[%c2] : memref<31xf32, #tpu.memory_space<smem>>
    %25 = vector.broadcast %24 : f32 to vector<8x384xf32>
    %26 = arith.cmpf oge, %10, %25 : vector<8x384xf32>
    %27 = arith.extui %26 : vector<8x384xi1> to vector<8x384xi32>
    %28 = arith.sitofp %27 : vector<8x384xi32> to vector<8x384xf32>
    %29 = arith.addf %23, %28 : vector<8x384xf32>
    %c3 = arith.constant 3 : index
    %30 = memref.load %arg1[%c3] : memref<31xf32, #tpu.memory_space<smem>>
    %31 = vector.broadcast %30 : f32 to vector<8x384xf32>
    %32 = arith.cmpf oge, %10, %31 : vector<8x384xf32>
    %33 = arith.extui %32 : vector<8x384xi1> to vector<8x384xi32>
    %34 = arith.sitofp %33 : vector<8x384xi32> to vector<8x384xf32>
    %35 = arith.addf %29, %34 : vector<8x384xf32>
    %c4 = arith.constant 4 : index
    %36 = memref.load %arg1[%c4] : memref<31xf32, #tpu.memory_space<smem>>
    %37 = vector.broadcast %36 : f32 to vector<8x384xf32>
    %38 = arith.cmpf oge, %10, %37 : vector<8x384xf32>
    %39 = arith.extui %38 : vector<8x384xi1> to vector<8x384xi32>
    %40 = arith.sitofp %39 : vector<8x384xi32> to vector<8x384xf32>
    %41 = arith.addf %35, %40 : vector<8x384xf32>
    %c5 = arith.constant 5 : index
    %42 = memref.load %arg1[%c5] : memref<31xf32, #tpu.memory_space<smem>>
    %43 = vector.broadcast %42 : f32 to vector<8x384xf32>
    %44 = arith.cmpf oge, %10, %43 : vector<8x384xf32>
    %45 = arith.extui %44 : vector<8x384xi1> to vector<8x384xi32>
    %46 = arith.sitofp %45 : vector<8x384xi32> to vector<8x384xf32>
    %47 = arith.addf %41, %46 : vector<8x384xf32>
    %c6 = arith.constant 6 : index
    %48 = memref.load %arg1[%c6] : memref<31xf32, #tpu.memory_space<smem>>
    %49 = vector.broadcast %48 : f32 to vector<8x384xf32>
    %50 = arith.cmpf oge, %10, %49 : vector<8x384xf32>
    %51 = arith.extui %50 : vector<8x384xi1> to vector<8x384xi32>
    %52 = arith.sitofp %51 : vector<8x384xi32> to vector<8x384xf32>
    %53 = arith.addf %47, %52 : vector<8x384xf32>
    %c7 = arith.constant 7 : index
    %54 = memref.load %arg1[%c7] : memref<31xf32, #tpu.memory_space<smem>>
    %55 = vector.broadcast %54 : f32 to vector<8x384xf32>
    %56 = arith.cmpf oge, %10, %55 : vector<8x384xf32>
    %57 = arith.extui %56 : vector<8x384xi1> to vector<8x384xi32>
    %58 = arith.sitofp %57 : vector<8x384xi32> to vector<8x384xf32>
    %59 = arith.addf %53, %58 : vector<8x384xf32>
    %c8 = arith.constant 8 : index
    %60 = memref.load %arg1[%c8] : memref<31xf32, #tpu.memory_space<smem>>
    %61 = vector.broadcast %60 : f32 to vector<8x384xf32>
    %62 = arith.cmpf oge, %10, %61 : vector<8x384xf32>
    %63 = arith.extui %62 : vector<8x384xi1> to vector<8x384xi32>
    %64 = arith.sitofp %63 : vector<8x384xi32> to vector<8x384xf32>
    %65 = arith.addf %59, %64 : vector<8x384xf32>
    %c9 = arith.constant 9 : index
    %66 = memref.load %arg1[%c9] : memref<31xf32, #tpu.memory_space<smem>>
    %67 = vector.broadcast %66 : f32 to vector<8x384xf32>
    %68 = arith.cmpf oge, %10, %67 : vector<8x384xf32>
    %69 = arith.extui %68 : vector<8x384xi1> to vector<8x384xi32>
    %70 = arith.sitofp %69 : vector<8x384xi32> to vector<8x384xf32>
    %71 = arith.addf %65, %70 : vector<8x384xf32>
    %c10 = arith.constant 10 : index
    %72 = memref.load %arg1[%c10] : memref<31xf32, #tpu.memory_space<smem>>
    %73 = vector.broadcast %72 : f32 to vector<8x384xf32>
    %74 = arith.cmpf oge, %10, %73 : vector<8x384xf32>
    %75 = arith.extui %74 : vector<8x384xi1> to vector<8x384xi32>
    %76 = arith.sitofp %75 : vector<8x384xi32> to vector<8x384xf32>
    %77 = arith.addf %71, %76 : vector<8x384xf32>
    %c11 = arith.constant 11 : index
    %78 = memref.load %arg1[%c11] : memref<31xf32, #tpu.memory_space<smem>>
    %79 = vector.broadcast %78 : f32 to vector<8x384xf32>
    %80 = arith.cmpf oge, %10, %79 : vector<8x384xf32>
    %81 = arith.extui %80 : vector<8x384xi1> to vector<8x384xi32>
    %82 = arith.sitofp %81 : vector<8x384xi32> to vector<8x384xf32>
    %83 = arith.addf %77, %82 : vector<8x384xf32>
    %c12 = arith.constant 12 : index
    %84 = memref.load %arg1[%c12] : memref<31xf32, #tpu.memory_space<smem>>
    %85 = vector.broadcast %84 : f32 to vector<8x384xf32>
    %86 = arith.cmpf oge, %10, %85 : vector<8x384xf32>
    %87 = arith.extui %86 : vector<8x384xi1> to vector<8x384xi32>
    %88 = arith.sitofp %87 : vector<8x384xi32> to vector<8x384xf32>
    %89 = arith.addf %83, %88 : vector<8x384xf32>
    %c13 = arith.constant 13 : index
    %90 = memref.load %arg1[%c13] : memref<31xf32, #tpu.memory_space<smem>>
    %91 = vector.broadcast %90 : f32 to vector<8x384xf32>
    %92 = arith.cmpf oge, %10, %91 : vector<8x384xf32>
    %93 = arith.extui %92 : vector<8x384xi1> to vector<8x384xi32>
    %94 = arith.sitofp %93 : vector<8x384xi32> to vector<8x384xf32>
    %95 = arith.addf %89, %94 : vector<8x384xf32>
    %c14 = arith.constant 14 : index
    %96 = memref.load %arg1[%c14] : memref<31xf32, #tpu.memory_space<smem>>
    %97 = vector.broadcast %96 : f32 to vector<8x384xf32>
    %98 = arith.cmpf oge, %10, %97 : vector<8x384xf32>
    %99 = arith.extui %98 : vector<8x384xi1> to vector<8x384xi32>
    %100 = arith.sitofp %99 : vector<8x384xi32> to vector<8x384xf32>
    %101 = arith.addf %95, %100 : vector<8x384xf32>
    %c15 = arith.constant 15 : index
    %102 = memref.load %arg1[%c15] : memref<31xf32, #tpu.memory_space<smem>>
    %103 = vector.broadcast %102 : f32 to vector<8x384xf32>
    %104 = arith.cmpf oge, %10, %103 : vector<8x384xf32>
    %105 = arith.extui %104 : vector<8x384xi1> to vector<8x384xi32>
    %106 = arith.sitofp %105 : vector<8x384xi32> to vector<8x384xf32>
    %107 = arith.addf %101, %106 : vector<8x384xf32>
    %c16 = arith.constant 16 : index
    %108 = memref.load %arg1[%c16] : memref<31xf32, #tpu.memory_space<smem>>
    %109 = vector.broadcast %108 : f32 to vector<8x384xf32>
    %110 = arith.cmpf oge, %10, %109 : vector<8x384xf32>
    %111 = arith.extui %110 : vector<8x384xi1> to vector<8x384xi32>
    %112 = arith.sitofp %111 : vector<8x384xi32> to vector<8x384xf32>
    %113 = arith.addf %107, %112 : vector<8x384xf32>
    %c17 = arith.constant 17 : index
    %114 = memref.load %arg1[%c17] : memref<31xf32, #tpu.memory_space<smem>>
    %115 = vector.broadcast %114 : f32 to vector<8x384xf32>
    %116 = arith.cmpf oge, %10, %115 : vector<8x384xf32>
    %117 = arith.extui %116 : vector<8x384xi1> to vector<8x384xi32>
    %118 = arith.sitofp %117 : vector<8x384xi32> to vector<8x384xf32>
    %119 = arith.addf %113, %118 : vector<8x384xf32>
    %c18 = arith.constant 18 : index
    %120 = memref.load %arg1[%c18] : memref<31xf32, #tpu.memory_space<smem>>
    %121 = vector.broadcast %120 : f32 to vector<8x384xf32>
    %122 = arith.cmpf oge, %10, %121 : vector<8x384xf32>
    %123 = arith.extui %122 : vector<8x384xi1> to vector<8x384xi32>
    %124 = arith.sitofp %123 : vector<8x384xi32> to vector<8x384xf32>
    %125 = arith.addf %119, %124 : vector<8x384xf32>
    %c19 = arith.constant 19 : index
    %126 = memref.load %arg1[%c19] : memref<31xf32, #tpu.memory_space<smem>>
    %127 = vector.broadcast %126 : f32 to vector<8x384xf32>
    %128 = arith.cmpf oge, %10, %127 : vector<8x384xf32>
    %129 = arith.extui %128 : vector<8x384xi1> to vector<8x384xi32>
    %130 = arith.sitofp %129 : vector<8x384xi32> to vector<8x384xf32>
    %131 = arith.addf %125, %130 : vector<8x384xf32>
    %c20 = arith.constant 20 : index
    %132 = memref.load %arg1[%c20] : memref<31xf32, #tpu.memory_space<smem>>
    %133 = vector.broadcast %132 : f32 to vector<8x384xf32>
    %134 = arith.cmpf oge, %10, %133 : vector<8x384xf32>
    %135 = arith.extui %134 : vector<8x384xi1> to vector<8x384xi32>
    %136 = arith.sitofp %135 : vector<8x384xi32> to vector<8x384xf32>
    %137 = arith.addf %131, %136 : vector<8x384xf32>
    %c21 = arith.constant 21 : index
    %138 = memref.load %arg1[%c21] : memref<31xf32, #tpu.memory_space<smem>>
    %139 = vector.broadcast %138 : f32 to vector<8x384xf32>
    %140 = arith.cmpf oge, %10, %139 : vector<8x384xf32>
    %141 = arith.extui %140 : vector<8x384xi1> to vector<8x384xi32>
    %142 = arith.sitofp %141 : vector<8x384xi32> to vector<8x384xf32>
    %143 = arith.addf %137, %142 : vector<8x384xf32>
    %c22 = arith.constant 22 : index
    %144 = memref.load %arg1[%c22] : memref<31xf32, #tpu.memory_space<smem>>
    %145 = vector.broadcast %144 : f32 to vector<8x384xf32>
    %146 = arith.cmpf oge, %10, %145 : vector<8x384xf32>
    %147 = arith.extui %146 : vector<8x384xi1> to vector<8x384xi32>
    %148 = arith.sitofp %147 : vector<8x384xi32> to vector<8x384xf32>
    %149 = arith.addf %143, %148 : vector<8x384xf32>
    %c23 = arith.constant 23 : index
    %150 = memref.load %arg1[%c23] : memref<31xf32, #tpu.memory_space<smem>>
    %151 = vector.broadcast %150 : f32 to vector<8x384xf32>
    %152 = arith.cmpf oge, %10, %151 : vector<8x384xf32>
    %153 = arith.extui %152 : vector<8x384xi1> to vector<8x384xi32>
    %154 = arith.sitofp %153 : vector<8x384xi32> to vector<8x384xf32>
    %155 = arith.addf %149, %154 : vector<8x384xf32>
    %c24 = arith.constant 24 : index
    %156 = memref.load %arg1[%c24] : memref<31xf32, #tpu.memory_space<smem>>
    %157 = vector.broadcast %156 : f32 to vector<8x384xf32>
    %158 = arith.cmpf oge, %10, %157 : vector<8x384xf32>
    %159 = arith.extui %158 : vector<8x384xi1> to vector<8x384xi32>
    %160 = arith.sitofp %159 : vector<8x384xi32> to vector<8x384xf32>
    %161 = arith.addf %155, %160 : vector<8x384xf32>
    %c25 = arith.constant 25 : index
    %162 = memref.load %arg1[%c25] : memref<31xf32, #tpu.memory_space<smem>>
    %163 = vector.broadcast %162 : f32 to vector<8x384xf32>
    %164 = arith.cmpf oge, %10, %163 : vector<8x384xf32>
    %165 = arith.extui %164 : vector<8x384xi1> to vector<8x384xi32>
    %166 = arith.sitofp %165 : vector<8x384xi32> to vector<8x384xf32>
    %167 = arith.addf %161, %166 : vector<8x384xf32>
    %c26 = arith.constant 26 : index
    %168 = memref.load %arg1[%c26] : memref<31xf32, #tpu.memory_space<smem>>
    %169 = vector.broadcast %168 : f32 to vector<8x384xf32>
    %170 = arith.cmpf oge, %10, %169 : vector<8x384xf32>
    %171 = arith.extui %170 : vector<8x384xi1> to vector<8x384xi32>
    %172 = arith.sitofp %171 : vector<8x384xi32> to vector<8x384xf32>
    %173 = arith.addf %167, %172 : vector<8x384xf32>
    %c27 = arith.constant 27 : index
    %174 = memref.load %arg1[%c27] : memref<31xf32, #tpu.memory_space<smem>>
    %175 = vector.broadcast %174 : f32 to vector<8x384xf32>
    %176 = arith.cmpf oge, %10, %175 : vector<8x384xf32>
    %177 = arith.extui %176 : vector<8x384xi1> to vector<8x384xi32>
    %178 = arith.sitofp %177 : vector<8x384xi32> to vector<8x384xf32>
    %179 = arith.addf %173, %178 : vector<8x384xf32>
    %c28 = arith.constant 28 : index
    %180 = memref.load %arg1[%c28] : memref<31xf32, #tpu.memory_space<smem>>
    %181 = vector.broadcast %180 : f32 to vector<8x384xf32>
    %182 = arith.cmpf oge, %10, %181 : vector<8x384xf32>
    %183 = arith.extui %182 : vector<8x384xi1> to vector<8x384xi32>
    %184 = arith.sitofp %183 : vector<8x384xi32> to vector<8x384xf32>
    %185 = arith.addf %179, %184 : vector<8x384xf32>
    %c29 = arith.constant 29 : index
    %186 = memref.load %arg1[%c29] : memref<31xf32, #tpu.memory_space<smem>>
    %187 = vector.broadcast %186 : f32 to vector<8x384xf32>
    %188 = arith.cmpf oge, %10, %187 : vector<8x384xf32>
    %189 = arith.extui %188 : vector<8x384xi1> to vector<8x384xi32>
    %190 = arith.sitofp %189 : vector<8x384xi32> to vector<8x384xf32>
    %191 = arith.addf %185, %190 : vector<8x384xf32>
    %c30 = arith.constant 30 : index
    %192 = memref.load %arg1[%c30] : memref<31xf32, #tpu.memory_space<smem>>
    %193 = vector.broadcast %192 : f32 to vector<8x384xf32>
    %194 = arith.cmpf oge, %10, %193 : vector<8x384xf32>
    %195 = arith.extui %194 : vector<8x384xi1> to vector<8x384xi32>
    %196 = arith.sitofp %195 : vector<8x384xi32> to vector<8x384xf32>
    %197 = arith.addf %191, %196 : vector<8x384xf32>
    %cst_9 = arith.constant 0.0294117648 : f32
    %198 = vector.broadcast %cst_9 : f32 to vector<8x384xf32>
    %199 = arith.mulf %197, %198 : vector<8x384xf32>
    %200 = vector.extract_strided_slice %9 {offsets = [0, 384], sizes = [8, 128], strides = [1, 1]} : vector<8x512xf32> to vector<8x128xf32>
    %cst_10 = arith.constant 0.000000e+00 : f32
    %201 = vector.broadcast %cst_10 : f32 to vector<8x128xf32>
    %c0_11 = arith.constant 0 : index
    %202 = memref.load %arg2[%c0_11] : memref<31xf32, #tpu.memory_space<smem>>
    %203 = vector.broadcast %202 : f32 to vector<8x128xf32>
    %204 = arith.cmpf oge, %200, %203 : vector<8x128xf32>
    %205 = arith.extui %204 : vector<8x128xi1> to vector<8x128xi32>
    %206 = arith.sitofp %205 : vector<8x128xi32> to vector<8x128xf32>
    %207 = arith.addf %201, %206 : vector<8x128xf32>
    %c1_12 = arith.constant 1 : index
    %208 = memref.load %arg2[%c1_12] : memref<31xf32, #tpu.memory_space<smem>>
    %209 = vector.broadcast %208 : f32 to vector<8x128xf32>
    %210 = arith.cmpf oge, %200, %209 : vector<8x128xf32>
    %211 = arith.extui %210 : vector<8x128xi1> to vector<8x128xi32>
    %212 = arith.sitofp %211 : vector<8x128xi32> to vector<8x128xf32>
    %213 = arith.addf %207, %212 : vector<8x128xf32>
    %c2_13 = arith.constant 2 : index
    %214 = memref.load %arg2[%c2_13] : memref<31xf32, #tpu.memory_space<smem>>
    %215 = vector.broadcast %214 : f32 to vector<8x128xf32>
    %216 = arith.cmpf oge, %200, %215 : vector<8x128xf32>
    %217 = arith.extui %216 : vector<8x128xi1> to vector<8x128xi32>
    %218 = arith.sitofp %217 : vector<8x128xi32> to vector<8x128xf32>
    %219 = arith.addf %213, %218 : vector<8x128xf32>
    %c3_14 = arith.constant 3 : index
    %220 = memref.load %arg2[%c3_14] : memref<31xf32, #tpu.memory_space<smem>>
    %221 = vector.broadcast %220 : f32 to vector<8x128xf32>
    %222 = arith.cmpf oge, %200, %221 : vector<8x128xf32>
    %223 = arith.extui %222 : vector<8x128xi1> to vector<8x128xi32>
    %224 = arith.sitofp %223 : vector<8x128xi32> to vector<8x128xf32>
    %225 = arith.addf %219, %224 : vector<8x128xf32>
    %c4_15 = arith.constant 4 : index
    %226 = memref.load %arg2[%c4_15] : memref<31xf32, #tpu.memory_space<smem>>
    %227 = vector.broadcast %226 : f32 to vector<8x128xf32>
    %228 = arith.cmpf oge, %200, %227 : vector<8x128xf32>
    %229 = arith.extui %228 : vector<8x128xi1> to vector<8x128xi32>
    %230 = arith.sitofp %229 : vector<8x128xi32> to vector<8x128xf32>
    %231 = arith.addf %225, %230 : vector<8x128xf32>
    %c5_16 = arith.constant 5 : index
    %232 = memref.load %arg2[%c5_16] : memref<31xf32, #tpu.memory_space<smem>>
    %233 = vector.broadcast %232 : f32 to vector<8x128xf32>
    %234 = arith.cmpf oge, %200, %233 : vector<8x128xf32>
    %235 = arith.extui %234 : vector<8x128xi1> to vector<8x128xi32>
    %236 = arith.sitofp %235 : vector<8x128xi32> to vector<8x128xf32>
    %237 = arith.addf %231, %236 : vector<8x128xf32>
    %c6_17 = arith.constant 6 : index
    %238 = memref.load %arg2[%c6_17] : memref<31xf32, #tpu.memory_space<smem>>
    %239 = vector.broadcast %238 : f32 to vector<8x128xf32>
    %240 = arith.cmpf oge, %200, %239 : vector<8x128xf32>
    %241 = arith.extui %240 : vector<8x128xi1> to vector<8x128xi32>
    %242 = arith.sitofp %241 : vector<8x128xi32> to vector<8x128xf32>
    %243 = arith.addf %237, %242 : vector<8x128xf32>
    %c7_18 = arith.constant 7 : index
    %244 = memref.load %arg2[%c7_18] : memref<31xf32, #tpu.memory_space<smem>>
    %245 = vector.broadcast %244 : f32 to vector<8x128xf32>
    %246 = arith.cmpf oge, %200, %245 : vector<8x128xf32>
    %247 = arith.extui %246 : vector<8x128xi1> to vector<8x128xi32>
    %248 = arith.sitofp %247 : vector<8x128xi32> to vector<8x128xf32>
    %249 = arith.addf %243, %248 : vector<8x128xf32>
    %c8_19 = arith.constant 8 : index
    %250 = memref.load %arg2[%c8_19] : memref<31xf32, #tpu.memory_space<smem>>
    %251 = vector.broadcast %250 : f32 to vector<8x128xf32>
    %252 = arith.cmpf oge, %200, %251 : vector<8x128xf32>
    %253 = arith.extui %252 : vector<8x128xi1> to vector<8x128xi32>
    %254 = arith.sitofp %253 : vector<8x128xi32> to vector<8x128xf32>
    %255 = arith.addf %249, %254 : vector<8x128xf32>
    %c9_20 = arith.constant 9 : index
    %256 = memref.load %arg2[%c9_20] : memref<31xf32, #tpu.memory_space<smem>>
    %257 = vector.broadcast %256 : f32 to vector<8x128xf32>
    %258 = arith.cmpf oge, %200, %257 : vector<8x128xf32>
    %259 = arith.extui %258 : vector<8x128xi1> to vector<8x128xi32>
    %260 = arith.sitofp %259 : vector<8x128xi32> to vector<8x128xf32>
    %261 = arith.addf %255, %260 : vector<8x128xf32>
    %c10_21 = arith.constant 10 : index
    %262 = memref.load %arg2[%c10_21] : memref<31xf32, #tpu.memory_space<smem>>
    %263 = vector.broadcast %262 : f32 to vector<8x128xf32>
    %264 = arith.cmpf oge, %200, %263 : vector<8x128xf32>
    %265 = arith.extui %264 : vector<8x128xi1> to vector<8x128xi32>
    %266 = arith.sitofp %265 : vector<8x128xi32> to vector<8x128xf32>
    %267 = arith.addf %261, %266 : vector<8x128xf32>
    %c11_22 = arith.constant 11 : index
    %268 = memref.load %arg2[%c11_22] : memref<31xf32, #tpu.memory_space<smem>>
    %269 = vector.broadcast %268 : f32 to vector<8x128xf32>
    %270 = arith.cmpf oge, %200, %269 : vector<8x128xf32>
    %271 = arith.extui %270 : vector<8x128xi1> to vector<8x128xi32>
    %272 = arith.sitofp %271 : vector<8x128xi32> to vector<8x128xf32>
    %273 = arith.addf %267, %272 : vector<8x128xf32>
    %c12_23 = arith.constant 12 : index
    %274 = memref.load %arg2[%c12_23] : memref<31xf32, #tpu.memory_space<smem>>
    %275 = vector.broadcast %274 : f32 to vector<8x128xf32>
    %276 = arith.cmpf oge, %200, %275 : vector<8x128xf32>
    %277 = arith.extui %276 : vector<8x128xi1> to vector<8x128xi32>
    %278 = arith.sitofp %277 : vector<8x128xi32> to vector<8x128xf32>
    %279 = arith.addf %273, %278 : vector<8x128xf32>
    %c13_24 = arith.constant 13 : index
    %280 = memref.load %arg2[%c13_24] : memref<31xf32, #tpu.memory_space<smem>>
    %281 = vector.broadcast %280 : f32 to vector<8x128xf32>
    %282 = arith.cmpf oge, %200, %281 : vector<8x128xf32>
    %283 = arith.extui %282 : vector<8x128xi1> to vector<8x128xi32>
    %284 = arith.sitofp %283 : vector<8x128xi32> to vector<8x128xf32>
    %285 = arith.addf %279, %284 : vector<8x128xf32>
    %c14_25 = arith.constant 14 : index
    %286 = memref.load %arg2[%c14_25] : memref<31xf32, #tpu.memory_space<smem>>
    %287 = vector.broadcast %286 : f32 to vector<8x128xf32>
    %288 = arith.cmpf oge, %200, %287 : vector<8x128xf32>
    %289 = arith.extui %288 : vector<8x128xi1> to vector<8x128xi32>
    %290 = arith.sitofp %289 : vector<8x128xi32> to vector<8x128xf32>
    %291 = arith.addf %285, %290 : vector<8x128xf32>
    %c15_26 = arith.constant 15 : index
    %292 = memref.load %arg2[%c15_26] : memref<31xf32, #tpu.memory_space<smem>>
    %293 = vector.broadcast %292 : f32 to vector<8x128xf32>
    %294 = arith.cmpf oge, %200, %293 : vector<8x128xf32>
    %295 = arith.extui %294 : vector<8x128xi1> to vector<8x128xi32>
    %296 = arith.sitofp %295 : vector<8x128xi32> to vector<8x128xf32>
    %297 = arith.addf %291, %296 : vector<8x128xf32>
    %c16_27 = arith.constant 16 : index
    %298 = memref.load %arg2[%c16_27] : memref<31xf32, #tpu.memory_space<smem>>
    %299 = vector.broadcast %298 : f32 to vector<8x128xf32>
    %300 = arith.cmpf oge, %200, %299 : vector<8x128xf32>
    %301 = arith.extui %300 : vector<8x128xi1> to vector<8x128xi32>
    %302 = arith.sitofp %301 : vector<8x128xi32> to vector<8x128xf32>
    %303 = arith.addf %297, %302 : vector<8x128xf32>
    %c17_28 = arith.constant 17 : index
    %304 = memref.load %arg2[%c17_28] : memref<31xf32, #tpu.memory_space<smem>>
    %305 = vector.broadcast %304 : f32 to vector<8x128xf32>
    %306 = arith.cmpf oge, %200, %305 : vector<8x128xf32>
    %307 = arith.extui %306 : vector<8x128xi1> to vector<8x128xi32>
    %308 = arith.sitofp %307 : vector<8x128xi32> to vector<8x128xf32>
    %309 = arith.addf %303, %308 : vector<8x128xf32>
    %c18_29 = arith.constant 18 : index
    %310 = memref.load %arg2[%c18_29] : memref<31xf32, #tpu.memory_space<smem>>
    %311 = vector.broadcast %310 : f32 to vector<8x128xf32>
    %312 = arith.cmpf oge, %200, %311 : vector<8x128xf32>
    %313 = arith.extui %312 : vector<8x128xi1> to vector<8x128xi32>
    %314 = arith.sitofp %313 : vector<8x128xi32> to vector<8x128xf32>
    %315 = arith.addf %309, %314 : vector<8x128xf32>
    %c19_30 = arith.constant 19 : index
    %316 = memref.load %arg2[%c19_30] : memref<31xf32, #tpu.memory_space<smem>>
    %317 = vector.broadcast %316 : f32 to vector<8x128xf32>
    %318 = arith.cmpf oge, %200, %317 : vector<8x128xf32>
    %319 = arith.extui %318 : vector<8x128xi1> to vector<8x128xi32>
    %320 = arith.sitofp %319 : vector<8x128xi32> to vector<8x128xf32>
    %321 = arith.addf %315, %320 : vector<8x128xf32>
    %c20_31 = arith.constant 20 : index
    %322 = memref.load %arg2[%c20_31] : memref<31xf32, #tpu.memory_space<smem>>
    %323 = vector.broadcast %322 : f32 to vector<8x128xf32>
    %324 = arith.cmpf oge, %200, %323 : vector<8x128xf32>
    %325 = arith.extui %324 : vector<8x128xi1> to vector<8x128xi32>
    %326 = arith.sitofp %325 : vector<8x128xi32> to vector<8x128xf32>
    %327 = arith.addf %321, %326 : vector<8x128xf32>
    %c21_32 = arith.constant 21 : index
    %328 = memref.load %arg2[%c21_32] : memref<31xf32, #tpu.memory_space<smem>>
    %329 = vector.broadcast %328 : f32 to vector<8x128xf32>
    %330 = arith.cmpf oge, %200, %329 : vector<8x128xf32>
    %331 = arith.extui %330 : vector<8x128xi1> to vector<8x128xi32>
    %332 = arith.sitofp %331 : vector<8x128xi32> to vector<8x128xf32>
    %333 = arith.addf %327, %332 : vector<8x128xf32>
    %c22_33 = arith.constant 22 : index
    %334 = memref.load %arg2[%c22_33] : memref<31xf32, #tpu.memory_space<smem>>
    %335 = vector.broadcast %334 : f32 to vector<8x128xf32>
    %336 = arith.cmpf oge, %200, %335 : vector<8x128xf32>
    %337 = arith.extui %336 : vector<8x128xi1> to vector<8x128xi32>
    %338 = arith.sitofp %337 : vector<8x128xi32> to vector<8x128xf32>
    %339 = arith.addf %333, %338 : vector<8x128xf32>
    %c23_34 = arith.constant 23 : index
    %340 = memref.load %arg2[%c23_34] : memref<31xf32, #tpu.memory_space<smem>>
    %341 = vector.broadcast %340 : f32 to vector<8x128xf32>
    %342 = arith.cmpf oge, %200, %341 : vector<8x128xf32>
    %343 = arith.extui %342 : vector<8x128xi1> to vector<8x128xi32>
    %344 = arith.sitofp %343 : vector<8x128xi32> to vector<8x128xf32>
    %345 = arith.addf %339, %344 : vector<8x128xf32>
    %c24_35 = arith.constant 24 : index
    %346 = memref.load %arg2[%c24_35] : memref<31xf32, #tpu.memory_space<smem>>
    %347 = vector.broadcast %346 : f32 to vector<8x128xf32>
    %348 = arith.cmpf oge, %200, %347 : vector<8x128xf32>
    %349 = arith.extui %348 : vector<8x128xi1> to vector<8x128xi32>
    %350 = arith.sitofp %349 : vector<8x128xi32> to vector<8x128xf32>
    %351 = arith.addf %345, %350 : vector<8x128xf32>
    %c25_36 = arith.constant 25 : index
    %352 = memref.load %arg2[%c25_36] : memref<31xf32, #tpu.memory_space<smem>>
    %353 = vector.broadcast %352 : f32 to vector<8x128xf32>
    %354 = arith.cmpf oge, %200, %353 : vector<8x128xf32>
    %355 = arith.extui %354 : vector<8x128xi1> to vector<8x128xi32>
    %356 = arith.sitofp %355 : vector<8x128xi32> to vector<8x128xf32>
    %357 = arith.addf %351, %356 : vector<8x128xf32>
    %c26_37 = arith.constant 26 : index
    %358 = memref.load %arg2[%c26_37] : memref<31xf32, #tpu.memory_space<smem>>
    %359 = vector.broadcast %358 : f32 to vector<8x128xf32>
    %360 = arith.cmpf oge, %200, %359 : vector<8x128xf32>
    %361 = arith.extui %360 : vector<8x128xi1> to vector<8x128xi32>
    %362 = arith.sitofp %361 : vector<8x128xi32> to vector<8x128xf32>
    %363 = arith.addf %357, %362 : vector<8x128xf32>
    %c27_38 = arith.constant 27 : index
    %364 = memref.load %arg2[%c27_38] : memref<31xf32, #tpu.memory_space<smem>>
    %365 = vector.broadcast %364 : f32 to vector<8x128xf32>
    %366 = arith.cmpf oge, %200, %365 : vector<8x128xf32>
    %367 = arith.extui %366 : vector<8x128xi1> to vector<8x128xi32>
    %368 = arith.sitofp %367 : vector<8x128xi32> to vector<8x128xf32>
    %369 = arith.addf %363, %368 : vector<8x128xf32>
    %c28_39 = arith.constant 28 : index
    %370 = memref.load %arg2[%c28_39] : memref<31xf32, #tpu.memory_space<smem>>
    %371 = vector.broadcast %370 : f32 to vector<8x128xf32>
    %372 = arith.cmpf oge, %200, %371 : vector<8x128xf32>
    %373 = arith.extui %372 : vector<8x128xi1> to vector<8x128xi32>
    %374 = arith.sitofp %373 : vector<8x128xi32> to vector<8x128xf32>
    %375 = arith.addf %369, %374 : vector<8x128xf32>
    %c29_40 = arith.constant 29 : index
    %376 = memref.load %arg2[%c29_40] : memref<31xf32, #tpu.memory_space<smem>>
    %377 = vector.broadcast %376 : f32 to vector<8x128xf32>
    %378 = arith.cmpf oge, %200, %377 : vector<8x128xf32>
    %379 = arith.extui %378 : vector<8x128xi1> to vector<8x128xi32>
    %380 = arith.sitofp %379 : vector<8x128xi32> to vector<8x128xf32>
    %381 = arith.addf %375, %380 : vector<8x128xf32>
    %c30_41 = arith.constant 30 : index
    %382 = memref.load %arg2[%c30_41] : memref<31xf32, #tpu.memory_space<smem>>
    %383 = vector.broadcast %382 : f32 to vector<8x128xf32>
    %384 = arith.cmpf oge, %200, %383 : vector<8x128xf32>
    %385 = arith.extui %384 : vector<8x128xi1> to vector<8x128xi32>
    %386 = arith.sitofp %385 : vector<8x128xi32> to vector<8x128xf32>
    %387 = arith.addf %381, %386 : vector<8x128xf32>
    %cst_42 = arith.constant 0.0588235296 : f32
    %388 = vector.broadcast %cst_42 : f32 to vector<8x128xf32>
    %389 = arith.mulf %387, %388 : vector<8x128xf32>
    %cst_43 = arith.constant 1.000000e+00 : f32
    %390 = vector.broadcast %cst_43 : f32 to vector<8x128xf32>
    %391 = arith.subf %389, %390 : vector<8x128xf32>
    %392 = vector.extract_strided_slice %199 {offsets = [0, 0], sizes = [8, 128], strides = [1, 1]} : vector<8x384xf32> to vector<8x128xf32>
    %393 = vector.extract_strided_slice %199 {offsets = [0, 128], sizes = [8, 128], strides = [1, 1]} : vector<8x384xf32> to vector<8x128xf32>
    %394 = vector.extract_strided_slice %199 {offsets = [0, 256], sizes = [8, 128], strides = [1, 1]} : vector<8x384xf32> to vector<8x128xf32>
    %c0_44 = arith.constant 0 : index
    %c0_45 = arith.constant 0 : index
    %395 = vector.load %arg11[%c0_44, %c0_45] : memref<8x128xf32, #tpu.memory_space<vmem>>, vector<8x128xf32>
    %396 = arith.mulf %393, %395 : vector<8x128xf32>
    %397 = arith.mulf %392, %391 : vector<8x128xf32>
    %398 = arith.addf %396, %397 : vector<8x128xf32>
    %399 = math.tanh %398 : vector<8x128xf32>
    %400 = arith.mulf %394, %399 : vector<8x128xf32>
    %401 = arith.truncf %400 : vector<8x128xf32> to vector<8x128xbf16>
    %c0_46 = arith.constant 0 : index
    %c0_47 = arith.constant 0 : index
    %402 = vector.load %arg5[%c0_46, %c0_47] : memref<128x128xbf16, #tpu.memory_space<vmem>>, vector<128x128xbf16>
    %cst_48 = arith.constant dense<0.000000e+00> : vector<8x128xf32>
    %403 = tpu.matmul %401, %402, %cst_48 {dimension_numbers = #tpu.dot_dimension_numbers<[1], [0], [0], [1], [0, 0, 1, 1], [], []>} : vector<8x128xbf16>, vector<128x128xbf16>, vector<8x128xf32> -> vector<8x128xf32>
    %c0_49 = arith.constant 0 : index
    %c0_50 = arith.constant 0 : index
    %404 = vector.load %arg6[%c0_49, %c0_50] : memref<1x128xf32, #tpu.memory_space<vmem>>, vector<1x128xf32>
    %405 = vector.broadcast %404 : vector<1x128xf32> to vector<8x128xf32>
    %406 = arith.addf %403, %405 : vector<8x128xf32>
    %c0_51 = arith.constant 0 : index
    %c0_52 = arith.constant 0 : index
    %407 = vector.load %arg11[%c0_51, %c0_52] : memref<8x128xf32, #tpu.memory_space<vmem>>, vector<8x128xf32>
    tpu.vector_store %arg11[%c0_51, %c0_52], %398 {strides = array<i32>} : memref<8x128xf32, #tpu.memory_space<vmem>>, vector<8x128xf32>,
    %c0_53 = arith.constant 0 : index
    %c0_54 = arith.constant 0 : index
    %408 = vector.load %arg10[%c0_53, %c0_54] : memref<8x128xf32, #tpu.memory_space<vmem>>, vector<8x128xf32>
    tpu.vector_store %arg10[%c0_53, %c0_54], %406 {strides = array<i32>} : memref<8x128xf32, #tpu.memory_space<vmem>>, vector<8x128xf32>,
    %c0_55 = arith.constant 0 : index
    %c0_56 = arith.constant 0 : index
    %c0_57 = arith.constant 0 : index
    %409 = vector.load %arg7[%c0_55, %c0_56, %c0_57] : memref<1x8x128xf32, #tpu.memory_space<vmem>>, vector<1x8x128xf32>
    %410 = vector.shape_cast %409 : vector<1x8x128xf32> to vector<8x128xf32>
    %411 = vector.shape_cast %406 : vector<8x128xf32> to vector<1x8x128xf32>
    tpu.vector_store %arg7[%c0_55, %c0_56, %c0_57], %411 {strides = array<i32>} : memref<1x8x128xf32, #tpu.memory_space<vmem>>, vector<1x8x128xf32>,
    %c7_i32 = arith.constant 7 : i32
    %412 = arith.cmpi eq, %arg0, %c7_i32 : i32
    %413 = arith.extui %412 : i1 to i32
    %c0_i32_58 = arith.constant 0 : i32
    %414 = arith.cmpi ne, %413, %c0_i32_58 : i32
    scf.if %414 {
      %c0_59 = arith.constant 0 : index
      %c0_60 = arith.constant 0 : index
      %415 = vector.load %arg8[%c0_59, %c0_60] : memref<8x128xf32, #tpu.memory_space<vmem>>, vector<8x128xf32>
      tpu.vector_store %arg8[%c0_59, %c0_60], %406 {strides = array<i32>} : memref<8x128xf32, #tpu.memory_space<vmem>>, vector<8x128xf32>,
      %c0_61 = arith.constant 0 : index
      %c0_62 = arith.constant 0 : index
      %416 = vector.load %arg9[%c0_61, %c0_62] : memref<8x128xf32, #tpu.memory_space<vmem>>, vector<8x128xf32>
      tpu.vector_store %arg9[%c0_61, %c0_62], %398 {strides = array<i32>} : memref<8x128xf32, #tpu.memory_space<vmem>>, vector<8x128xf32>,
    } else {
    }
    return
  }
  func.func @transform_0(%arg0: i32) -> i32 {
    %c0_i32 = arith.constant 0 : i32
    %c0_i32_0 = arith.constant 0 : i32
    return %c0_i32 : i32
  }
  func.func @transform_1(%arg0: i32) -> i32 {
    %c0_i32 = arith.constant 0 : i32
    %c0_i32_0 = arith.constant 0 : i32
    return %c0_i32 : i32
  }
  func.func @transform_2(%arg0: i32) -> (i32, i32, i32) {
    %c0_i32 = arith.constant 0 : i32
    %c0_i32_0 = arith.constant 0 : i32
    %c0_i32_1 = arith.constant 0 : i32
    return %arg0, %c0_i32, %c0_i32_0 : i32, i32, i32
  }
  func.func @transform_3(%arg0: i32) -> (i32, i32) {
    %c0_i32 = arith.constant 0 : i32
    %c0_i32_0 = arith.constant 0 : i32
    %c0_i32_1 = arith.constant 0 : i32
    return %c0_i32, %c0_i32_0 : i32, i32
  }
  func.func @transform_4(%arg0: i32) -> (i32, i32) {
    %c0_i32 = arith.constant 0 : i32
    %c0_i32_0 = arith.constant 0 : i32
    %c0_i32_1 = arith.constant 0 : i32
    return %c0_i32, %c0_i32_0 : i32, i32
  }
  func.func @transform_5(%arg0: i32) -> (i32, i32) {
    %c0_i32 = arith.constant 0 : i32
    %c0_i32_0 = arith.constant 0 : i32
    %c0_i32_1 = arith.constant 0 : i32
    return %c0_i32, %c0_i32_0 : i32, i32
  }
  func.func @transform_6(%arg0: i32) -> (i32, i32, i32) {
    %c0_i32 = arith.constant 0 : i32
    %c0_i32_0 = arith.constant 0 : i32
    %c0_i32_1 = arith.constant 0 : i32
    return %arg0, %c0_i32, %c0_i32_0 : i32, i32, i32
  }
  func.func @transform_7(%arg0: i32) -> (i32, i32) {
    %c0_i32 = arith.constant 0 : i32
    %c0_i32_0 = arith.constant 0 : i32
    %c0_i32_1 = arith.constant 0 : i32
    return %c0_i32, %c0_i32_0 : i32, i32
  }
  func.func @transform_8(%arg0: i32) -> (i32, i32) {
    %c0_i32 = arith.constant 0 : i32
    %c0_i32_0 = arith.constant 0 : i32
    %c0_i32_1 = arith.constant 0 : i32
    return %c0_i32, %c0_i32_0 : i32, i32
  }
}

</mosaic_0001>

<llo_original>
// kernel: ptb_lstm_forward.1
$region0: #{ptb_lstm_forward.1}
  #allocation0 [shape = 'u32[]', space=smem, size = 0x4, offset = 0x4, fixed_abs, tag = 'smem constant byte address 0x4 - core index']
  #allocation1 [shape = 'u32[144,128]{1,0:T(1,128)}', space=vmem, size = 0x12000, scoped, tag = 'internal scratch']
  #allocation2 [shape = 'f32[8,128]{1,0:T(8,128)}', space=vmem, size = 0x1000, scoped, tag = 'scratch operand']
  #allocation3 [shape = 'f32[8,128]{1,0:T(8,128)}', space=vmem, size = 0x1000, scoped, tag = 'scratch operand']
  %s0 = inlined_call_operand.hbm [shape: f32[31], index: 0, kind: input, shape index: {}]
  %s1 = inlined_call_operand.hbm [shape: f32[31], index: 1, kind: input, shape index: {}]
  %s2 = inlined_call_operand.hbm [shape: f32[8,8,512], index: 2, kind: input, shape index: {}]
  %s3 = inlined_call_operand.hbm [shape: bf16[128,512], index: 3, kind: input, shape index: {}]
  %s4 = inlined_call_operand.hbm [shape: bf16[128,128], index: 4, kind: input, shape index: {}]
  %s5 = inlined_call_operand.hbm [shape: f32[1,128], index: 5, kind: input, shape index: {}]
  %s6 = inlined_call_operand.hbm [shape: f32[8,8,128], index: 6, kind: output, shape index: {0}]
  %s7 = inlined_call_operand.hbm [shape: f32[8,128], index: 7, kind: output, shape index: {1}]
  %s8 = inlined_call_operand.hbm [shape: f32[8,128], index: 8, kind: output, shape index: {2}]
  %9 = xla_tuple %s6, %s7, %s8
  %s10 = sld [smem:[#allocation0]]
  $region105: #{ptb_lstm_forward.1} parent=0
    _
  %s12 = ssub.s32 1, %s10
  %s13 = scalar_select 0, %s12, %s10
  $region1: #{ptb_lstm_forward.1} parent=0
    #allocation4 [shape = 'u8[512]{0}', space=smem, size = 0x200, scoped, tag = 'input window, operand 0, single buffered']
    #allocation5 [shape = 's32[2]{0}', space=sflag, size = 0x8, scoped, tag = 'scoped memory for ptb_lstm_forward.1']
    #allocation6 [shape = 's32[2]{0}', space=sflag, size = 0x8, scoped, tag = 'scoped memory for ptb_lstm_forward.1']
    #allocation7 [shape = 's32[2]{0}', space=sflag, size = 0x8, scoped, tag = 'scoped memory for ptb_lstm_forward.1']
    #allocation8 [shape = 'u8[512]{0}', space=smem, size = 0x200, scoped, tag = 'input window, operand 1, single buffered']
    #allocation9 [shape = 's32[1]{0}', space=sflag, size = 0x4, scoped, tag = 'scoped memory for ptb_lstm_forward.1']
    #allocation10 [shape = 'u8[32768]{0}', space=vmem, size = 0x8000, scoped, tag = 'input window, operand 2']
    #allocation11 [shape = 'u8[131072]{0}', space=vmem, size = 0x20000, scoped, tag = 'input window, operand 3, single buffered']
    #allocation12 [shape = 's32[1]{0}', space=sflag, size = 0x4, scoped, tag = 'scoped memory for ptb_lstm_forward.1']
    #allocation13 [shape = 'u8[32768]{0}', space=vmem, size = 0x8000, scoped, tag = 'input window, operand 4, single buffered']
    #allocation14 [shape = 'u8[512]{0}', space=vmem, size = 0x400, scoped, tag = 'input window, operand 5, single buffered']
    #allocation15 [shape = 's32[1]{0}', space=sflag, size = 0x4, scoped, tag = 'scoped memory for ptb_lstm_forward.1']
    #allocation16 [shape = 'u8[8192]{0}', space=vmem, size = 0x2000, scoped, tag = 'output window, operand 0']
    #allocation17 [shape = 'u8[4096]{0}', space=vmem, size = 0x1000, scoped, tag = 'output window, operand 1, single buffered']
    #allocation18 [shape = 's32[1]{0}', space=sflag, size = 0x4, scoped, tag = 'scoped memory for ptb_lstm_forward.1']
    #allocation19 [shape = 'u8[4096]{0}', space=vmem, size = 0x1000, scoped, tag = 'output window, operand 2, single buffered']
    %14 = vsyncpa [#allocation7], 0
    %15 = vsyncpa [#allocation9], 0
    %16 = vsyncpa [#allocation5], 0
    %s17 = scalar_lea.sflag [#allocation5], 1
    %18 = vsyncpa %s17, 0
    %19 = vsyncpa [#allocation12], 0
    %20 = vsyncpa [#allocation15], 0
    %21 = vsyncpa [#allocation6], 0
    %s22 = scalar_lea.sflag [#allocation6], 1
    %23 = vsyncpa %s22, 0
    %24 = vsyncpa [#allocation18], 0
    loop: start=0, step=1, limit=10
    $region2: #{ptb_lstm_forward.1} parent=1 // loop_pre_header
      _
    $region3: #{ptb_lstm_forward.1} parent=1 // loop_header
      %s26 = sphi 0, %s30
      %p27 = scmp.ge.s32.totalorder %s26, 10
      %s34 = sphi 0, %s34
      %s36 = sphi 0, %s34
      %s37 = sphi 0, %s36
      %s51 = sphi 0, %s37
      %s55 = sphi 0, %s55
      %s57 = sphi 0, %s55
      %s58 = sphi 0, %s57
      %s72 = sphi 0, %s58
      %s78 = sphi 0, %s80
      %s81 = sphi 0, %s78
      %s82 = sphi 0, %s81
      %s98 = sphi 0, %s82
      %s102 = sphi 0, %s102
      %s104 = sphi 0, %s102
      %s105 = sphi 0, %s104
      %s119 = sphi 0, %s105
      %s123 = sphi 0, %s123
      %s125 = sphi 0, %s123
      %s126 = sphi 0, %s125
      %s140 = sphi 0, %s126
      %s144 = sphi 0, %s144
      %s146 = sphi 0, %s144
      %s147 = sphi 0, %s146
      %s161 = sphi 0, %s147
      %s167 = sphi 0, %s169
      %s170 = sphi 0, %s167
      %s171 = sphi 0, %s170
      %s187 = sphi 0, %s171
      %s191 = sphi 0, %s191
      %s193 = sphi 0, %s191
      %s194 = sphi 0, %s193
      %s208 = sphi 0, %s194
      %s212 = sphi 0, %s212
      %s214 = sphi 0, %s212
      %s215 = sphi 0, %s214
      %s229 = sphi 0, %s215
    $region4: #{ptb_lstm_forward.1} parent=1 // loop_header_branch
      %29 = sbr.rel (%p27) target = $region8
    $region5: #{ptb_lstm_forward.1} parent=1 // loop_body
      %s31 = ssub.s32 %s26, 1
      %s32 = ssub.s32 %s26, 2
      %s33 = sadd.s32 %s26, 1
      %s35 = sadd.s32 %s34, 1
      %p38 = scmp.eq.s32.totalorder %s26, 7
      %p39 = scmp.ne.s32.totalorder %s34, %s36
      %p40 = scmp.eq.s32.totalorder %s26, 0
      %p41 = por %p39, %p40
      %p42 = scmp.ne.s32.totalorder %s34, %s36
      %p43 = scmp.eq.s32.totalorder %s31, 7
      %p44 = por %p42, %p43
      %p45 = scmp.ne.s32.totalorder %s36, %s37
      %p46 = scmp.eq.s32.totalorder %s31, 0
      %p47 = por %p45, %p46
      %p48 = scmp.ne.s32.totalorder %s36, %s37
      %p49 = scmp.eq.s32.totalorder %s32, 7
      %p50 = por %p48, %p49
      %p52 = scmp.ne.s32.totalorder %s37, %s51
      %p53 = scmp.eq.s32.totalorder %s32, 0
      %p54 = por %p52, %p53
      %s56 = sadd.s32 %s55, 1
      %p59 = scmp.eq.s32.totalorder %s26, 7
      %p60 = scmp.ne.s32.totalorder %s55, %s57
      %p61 = scmp.eq.s32.totalorder %s26, 0
      %p62 = por %p60, %p61
      %p63 = scmp.ne.s32.totalorder %s55, %s57
      %p64 = scmp.eq.s32.totalorder %s31, 7
      %p65 = por %p63, %p64
      %p66 = scmp.ne.s32.totalorder %s57, %s58
      %p67 = scmp.eq.s32.totalorder %s31, 0
      %p68 = por %p66, %p67
      %p69 = scmp.ne.s32.totalorder %s57, %s58
      %p70 = scmp.eq.s32.totalorder %s32, 7
      %p71 = por %p69, %p70
      %p73 = scmp.ne.s32.totalorder %s58, %s72
      %p74 = scmp.eq.s32.totalorder %s32, 0
      %p75 = por %p73, %p74
      %s76 = ssub.s32 %s26, %s33
      %p77 = scmp.eq.s32.totalorder %s76, 0
      %s79 = sadd.s32 %s78, 1
      %s80 = scalar_select %p77, %s78, %s79
      %p83 = pneg %p77
      %p84 = scmp.eq.s32.totalorder %s26, 7
      %p85 = por %p83, %p84
      %p86 = scmp.ne.s32.totalorder %s78, %s81
      %p87 = scmp.eq.s32.totalorder %s26, 0
      %p88 = por %p86, %p87
      %p89 = scmp.ne.s32.totalorder %s78, %s81
      %p90 = scmp.eq.s32.totalorder %s31, 7
      %p91 = por %p89, %p90
      %p92 = scmp.ne.s32.totalorder %s81, %s82
      %p93 = scmp.eq.s32.totalorder %s31, 0
      %p94 = por %p92, %p93
      %p95 = scmp.ne.s32.totalorder %s81, %s82
      %p96 = scmp.eq.s32.totalorder %s32, 7
      %p97 = por %p95, %p96
      %p99 = scmp.ne.s32.totalorder %s82, %s98
      %p100 = scmp.eq.s32.totalorder %s32, 0
      %p101 = por %p99, %p100
      %s103 = sadd.s32 %s102, 1
      %p106 = scmp.eq.s32.totalorder %s26, 7
      %p107 = scmp.ne.s32.totalorder %s102, %s104
      %p108 = scmp.eq.s32.totalorder %s26, 0
      %p109 = por %p107, %p108
      %p110 = scmp.ne.s32.totalorder %s102, %s104
      %p111 = scmp.eq.s32.totalorder %s31, 7
      %p112 = por %p110, %p111
      %p113 = scmp.ne.s32.totalorder %s104, %s105
      %p114 = scmp.eq.s32.totalorder %s31, 0
      %p115 = por %p113, %p114
      %p116 = scmp.ne.s32.totalorder %s104, %s105
      %p117 = scmp.eq.s32.totalorder %s32, 7
      %p118 = por %p116, %p117
      %p120 = scmp.ne.s32.totalorder %s105, %s119
      %p121 = scmp.eq.s32.totalorder %s32, 0
      %p122 = por %p120, %p121
      %s124 = sadd.s32 %s123, 1
      %p127 = scmp.eq.s32.totalorder %s26, 7
      %p128 = scmp.ne.s32.totalorder %s123, %s125
      %p129 = scmp.eq.s32.totalorder %s26, 0
      %p130 = por %p128, %p129
      %p131 = scmp.ne.s32.totalorder %s123, %s125
      %p132 = scmp.eq.s32.totalorder %s31, 7
      %p133 = por %p131, %p132
      %p134 = scmp.ne.s32.totalorder %s125, %s126
      %p135 = scmp.eq.s32.totalorder %s31, 0
      %p136 = por %p134, %p135
      %p137 = scmp.ne.s32.totalorder %s125, %s126
      %p138 = scmp.eq.s32.totalorder %s32, 7
      %p139 = por %p137, %p138
      %p141 = scmp.ne.s32.totalorder %s126, %s140
      %p142 = scmp.eq.s32.totalorder %s32, 0
      %p143 = por %p141, %p142
      %s145 = sadd.s32 %s144, 1
      %p148 = scmp.eq.s32.totalorder %s26, 7
      %p149 = scmp.ne.s32.totalorder %s144, %s146
      %p150 = scmp.eq.s32.totalorder %s26, 0
      %p151 = por %p149, %p150
      %p152 = scmp.ne.s32.totalorder %s144, %s146
      %p153 = scmp.eq.s32.totalorder %s31, 7
      %p154 = por %p152, %p153
      %p155 = scmp.ne.s32.totalorder %s146, %s147
      %p156 = scmp.eq.s32.totalorder %s31, 0
      %p157 = por %p155, %p156
      %p158 = scmp.ne.s32.totalorder %s146, %s147
      %p159 = scmp.eq.s32.totalorder %s32, 7
      %p160 = por %p158, %p159
      %p162 = scmp.ne.s32.totalorder %s147, %s161
      %p163 = scmp.eq.s32.totalorder %s32, 0
      %p164 = por %p162, %p163
      %s165 = ssub.s32 %s26, %s33
      %p166 = scmp.eq.s32.totalorder %s165, 0
      %s168 = sadd.s32 %s167, 1
      %s169 = scalar_select %p166, %s167, %s168
      %p172 = pneg %p166
      %p173 = scmp.eq.s32.totalorder %s26, 7
      %p174 = por %p172, %p173
      %p175 = scmp.ne.s32.totalorder %s167, %s170
      %p176 = scmp.eq.s32.totalorder %s26, 0
      %p177 = por %p175, %p176
      %p178 = scmp.ne.s32.totalorder %s167, %s170
      %p179 = scmp.eq.s32.totalorder %s31, 7
      %p180 = por %p178, %p179
      %p181 = scmp.ne.s32.totalorder %s170, %s171
      %p182 = scmp.eq.s32.totalorder %s31, 0
      %p183 = por %p181, %p182
      %p184 = scmp.ne.s32.totalorder %s170, %s171
      %p185 = scmp.eq.s32.totalorder %s32, 7
      %p186 = por %p184, %p185
      %p188 = scmp.ne.s32.totalorder %s171, %s187
      %p189 = scmp.eq.s32.totalorder %s32, 0
      %p190 = por %p188, %p189
      %s192 = sadd.s32 %s191, 1
      %p195 = scmp.eq.s32.totalorder %s26, 7
      %p196 = scmp.ne.s32.totalorder %s191, %s193
      %p197 = scmp.eq.s32.totalorder %s26, 0
      %p198 = por %p196, %p197
      %p199 = scmp.ne.s32.totalorder %s191, %s193
      %p200 = scmp.eq.s32.totalorder %s31, 7
      %p201 = por %p199, %p200
      %p202 = scmp.ne.s32.totalorder %s193, %s194
      %p203 = scmp.eq.s32.totalorder %s31, 0
      %p204 = por %p202, %p203
      %p205 = scmp.ne.s32.totalorder %s193, %s194
      %p206 = scmp.eq.s32.totalorder %s32, 7
      %p207 = por %p205, %p206
      %p209 = scmp.ne.s32.totalorder %s194, %s208
      %p210 = scmp.eq.s32.totalorder %s32, 0
      %p211 = por %p209, %p210
      %s213 = sadd.s32 %s212, 1
      %p216 = scmp.eq.s32.totalorder %s26, 7
      %p217 = scmp.ne.s32.totalorder %s212, %s214
      %p218 = scmp.eq.s32.totalorder %s26, 0
      %p219 = por %p217, %p218
      %p220 = scmp.ne.s32.totalorder %s212, %s214
      %p221 = scmp.eq.s32.totalorder %s31, 7
      %p222 = por %p220, %p221
      %p223 = scmp.ne.s32.totalorder %s214, %s215
      %p224 = scmp.eq.s32.totalorder %s31, 0
      %p225 = por %p223, %p224
      %p226 = scmp.ne.s32.totalorder %s214, %s215
      %p227 = scmp.eq.s32.totalorder %s32, 7
      %p228 = por %p226, %p227
      %p230 = scmp.ne.s32.totalorder %s215, %s229
      %p231 = scmp.eq.s32.totalorder %s32, 0
      %p232 = por %p230, %p231
      %p233 = scmp.le.s32.totalorder 1, %s26
      %p234 = scmp.lt.s32.totalorder %s26, 9
      %p235 = pnand %p233, %p234
      %p236 = pneg %p235
      // Predicated region
      $region9: #{ptb_lstm_forward.1} parent=5 // pred_check
        _
      $region10: #{ptb_lstm_forward.1} parent=5 // pred_check_branch
        %238 = sbr.rel (%p235) target = $region12
      $region11: #{ptb_lstm_forward.1} parent=5 // pred_region
        %s239 = ssub.s32 %s26, 1
        // Predicated region
        $region13: #{ptb_lstm_forward.1} parent=11 // pred_check
          %p240 = pneg %p47
        $region14: #{ptb_lstm_forward.1} parent=11 // pred_check_branch
          %242 = sbr.rel (%p240) target = $region16
        $region15: #{ptb_lstm_forward.1} parent=11 // pred_region
          %s244 = ssub.s32 16, 16
          %245 = vsyncadd [#allocation7], %s244
          %248 = dma.hbm_to_smem %s0, 16, [#allocation4], [#allocation7]
        $region16: #{ptb_lstm_forward.1} parent=11 // pred_fallthru
          _
        // Predicated region
        $region17: #{ptb_lstm_forward.1} parent=11 // pred_check
          %p249 = pneg %p68
        $region18: #{ptb_lstm_forward.1} parent=11 // pred_check_branch
          %251 = sbr.rel (%p249) target = $region20
        $region19: #{ptb_lstm_forward.1} parent=11 // pred_region
          %s253 = ssub.s32 16, 16
          %254 = vsyncadd [#allocation9], %s253
          %257 = dma.hbm_to_smem %s1, 16, [#allocation8], [#allocation9]
        $region20: #{ptb_lstm_forward.1} parent=11 // pred_fallthru
          _
        // Predicated region
        $region21: #{ptb_lstm_forward.1} parent=11 // pred_check
          %p258 = pneg %p115
        $region22: #{ptb_lstm_forward.1} parent=11 // pred_check_branch
          %260 = sbr.rel (%p258) target = $region24
        $region23: #{ptb_lstm_forward.1} parent=11 // pred_region
          %s262 = ssub.s32 4096, 4096
          %263 = vsyncadd [#allocation12], %s262
          %s264 = sshll.u32 [#allocation11], 4
          %s265 = int_to_ptr.vmem [resolvable:$true] %s264
          %270 = dma.hbm_to_vmem [thread:$0]  %s3, 4096, %s265, [#allocation12], 256, 256, 16
        $region24: #{ptb_lstm_forward.1} parent=11 // pred_fallthru
          _
        // Predicated region
        $region25: #{ptb_lstm_forward.1} parent=11 // pred_check
          %p271 = pneg %p136
        $region26: #{ptb_lstm_forward.1} parent=11 // pred_check_branch
          %273 = sbr.rel (%p271) target = $region28
        $region27: #{ptb_lstm_forward.1} parent=11 // pred_region
          %s275 = ssub.s32 1024, 1024
          %276 = vsyncadd [#allocation12], %s275
          %s277 = sshll.u32 [#allocation13], 4
          %s278 = int_to_ptr.vmem [resolvable:$true] %s277
          %283 = dma.hbm_to_vmem [thread:$0]  %s4, 1024, %s278, [#allocation12], 64, 64, 4
        $region28: #{ptb_lstm_forward.1} parent=11 // pred_fallthru
          _
        // Predicated region
        $region29: #{ptb_lstm_forward.1} parent=11 // pred_check
          %p284 = pneg %p157
        $region30: #{ptb_lstm_forward.1} parent=11 // pred_check_branch
          %286 = sbr.rel (%p284) target = $region32
        $region31: #{ptb_lstm_forward.1} parent=11 // pred_region
          %s288 = ssub.s32 16, 16
          %289 = vsyncadd [#allocation15], %s288
          %s291 = sshll.u32 [#allocation14], 4
          %s292 = int_to_ptr.vmem [resolvable:$true] %s291
          %294 = dma.hbm_to_vmem [thread:$0]  %s5, 16, %s292, [#allocation15]
        $region32: #{ptb_lstm_forward.1} parent=11 // pred_fallthru
          _
      $region12: #{ptb_lstm_forward.1} parent=5 // pred_fallthru
        _
      %p295 = scmp.lt.s32.totalorder %s26, 8
      // Predicated region
      $region33: #{ptb_lstm_forward.1} parent=5 // pred_check
        %p296 = pneg %p295
      $region34: #{ptb_lstm_forward.1} parent=5 // pred_check_branch
        %298 = sbr.rel (%p296) target = $region36
      $region35: #{ptb_lstm_forward.1} parent=5 // pred_region
        // Predicated region
        $region37: #{ptb_lstm_forward.1} parent=35 // pred_check
          %p299 = pneg %p88
        $region38: #{ptb_lstm_forward.1} parent=35 // pred_check_branch
          %301 = sbr.rel (%p299) target = $region40
        $region39: #{ptb_lstm_forward.1} parent=35 // pred_region
          %s302 = sand.u32 %s78, 1
          %s303 = scalar_lea.sflag [#allocation5], %s302
          %s304 = sand.u32 %s78, 1
          %s305 = smul.addr %s304, 32
          %s306 = scalar_lea.vmem [#allocation10], %s305
          %s308 = ssub.s32 512, 512
          %309 = vsyncadd %s303, %s308
          %s310 = smul.addr %s26, 4
          %s311 = smul.addr %s310, 128
          %s312 = scalar_lea.hbm %s2, %s311
          %s314 = sshll.u32 %s306, 4
          %s315 = int_to_ptr.vmem [resolvable:$true] %s314
          %317 = dma.hbm_to_vmem [thread:$0]  %s312, 512, %s315, %s303
        $region40: #{ptb_lstm_forward.1} parent=35 // pred_fallthru
          _
      $region36: #{ptb_lstm_forward.1} parent=5 // pred_fallthru
        _
      %p318 = scmp.le.s32.totalorder 1, %s26
      %p319 = scmp.lt.s32.totalorder %s26, 9
      %p320 = pnand %p318, %p319
      %p321 = pneg %p320
      // Predicated region
      $region41: #{ptb_lstm_forward.1} parent=5 // pred_check
        _
      $region42: #{ptb_lstm_forward.1} parent=5 // pred_check_branch
        %323 = sbr.rel (%p320) target = $region44
      $region43: #{ptb_lstm_forward.1} parent=5 // pred_region
        %s324 = ssub.s32 %s26, 1
        // Predicated region
        $region45: #{ptb_lstm_forward.1} parent=43 // pred_check
          %p325 = pneg %p47
        $region46: #{ptb_lstm_forward.1} parent=43 // pred_check_branch
          %327 = sbr.rel (%p325) target = $region48
        $region47: #{ptb_lstm_forward.1} parent=43 // pred_region
          %328 = dma.done [#allocation7], 16
        $region48: #{ptb_lstm_forward.1} parent=43 // pred_fallthru
          _
        // Predicated region
        $region49: #{ptb_lstm_forward.1} parent=43 // pred_check
          %p329 = pneg %p68
        $region50: #{ptb_lstm_forward.1} parent=43 // pred_check_branch
          %331 = sbr.rel (%p329) target = $region52
        $region51: #{ptb_lstm_forward.1} parent=43 // pred_region
          %332 = dma.done [#allocation9], 16
        $region52: #{ptb_lstm_forward.1} parent=43 // pred_fallthru
          _
        %s333 = sand.u32 %s81, 1
        %s334 = scalar_lea.sflag [#allocation5], %s333
        %s335 = sand.u32 %s81, 1
        %s336 = smul.addr %s335, 32
        %s337 = scalar_lea.vmem [#allocation10], %s336
        // Predicated region
        $region53: #{ptb_lstm_forward.1} parent=43 // pred_check
          %p338 = pneg %p94
        $region54: #{ptb_lstm_forward.1} parent=43 // pred_check_branch
          %340 = sbr.rel (%p338) target = $region56
        $region55: #{ptb_lstm_forward.1} parent=43 // pred_region
          %341 = dma.done %s334, 512
        $region56: #{ptb_lstm_forward.1} parent=43 // pred_fallthru
          _
        // Predicated region
        $region57: #{ptb_lstm_forward.1} parent=43 // pred_check
          %p342 = pneg %p115
        $region58: #{ptb_lstm_forward.1} parent=43 // pred_check_branch
          %344 = sbr.rel (%p342) target = $region60
        $region59: #{ptb_lstm_forward.1} parent=43 // pred_region
          %345 = dma.done [#allocation12], 4096
        $region60: #{ptb_lstm_forward.1} parent=43 // pred_fallthru
          _
        // Predicated region
        $region61: #{ptb_lstm_forward.1} parent=43 // pred_check
          %p346 = pneg %p136
        $region62: #{ptb_lstm_forward.1} parent=43 // pred_check_branch
          %348 = sbr.rel (%p346) target = $region64
        $region63: #{ptb_lstm_forward.1} parent=43 // pred_region
          %349 = dma.done [#allocation12], 1024
        $region64: #{ptb_lstm_forward.1} parent=43 // pred_fallthru
          _
        // Predicated region
        $region65: #{ptb_lstm_forward.1} parent=43 // pred_check
          %p350 = pneg %p157
        $region66: #{ptb_lstm_forward.1} parent=43 // pred_check_branch
          %352 = sbr.rel (%p350) target = $region68
        $region67: #{ptb_lstm_forward.1} parent=43 // pred_region
          %353 = dma.done [#allocation15], 16
        $region68: #{ptb_lstm_forward.1} parent=43 // pred_fallthru
          _
        %354 = sfence
        %p355 = pneg %p47
        %p356 = pneg %p44
        %p357 = pneg %p68
        %p358 = pneg %p65
        %s359 = sand.u32 %s81, 1
        %s360 = scalar_lea.sflag [#allocation5], %s359
        %s361 = sand.u32 %s81, 1
        %s362 = smul.addr %s361, 32
        %s363 = scalar_lea.vmem [#allocation10], %s362
        %p364 = pneg %p94
        %p365 = pneg %p91
        %p366 = pneg %p115
        %p367 = pneg %p112
        %p368 = pneg %p136
        %p369 = pneg %p133
        %p370 = pneg %p157
        %p371 = pneg %p154
        %p372 = pneg %p183
        %p373 = pneg %p180
        %s374 = sand.u32 %s170, 1
        %s375 = scalar_lea.sflag [#allocation6], %s374
        %s376 = sand.u32 %s170, 1
        %s377 = smul.addr %s376, 8
        %s378 = scalar_lea.vmem [#allocation16], %s377
        %p379 = pneg %p204
        %p380 = pneg %p201
        %p381 = pneg %p225
        %p382 = pneg %p222
        %p384 = scmp.eq.s32.totalorder %s31, 0
        // Predicated region
        $region69: #{ptb_lstm_forward.1} parent=43 // pred_check
          %p385 = pneg %p384
        $region70: #{ptb_lstm_forward.1} parent=43 // pred_check_branch
          %387 = sbr.rel (%p385) target = $region72
        $region71: #{ptb_lstm_forward.1} parent=43 // pred_region
          %388 = vst [vmem:[#allocation2] sm:$0xff] 0.0
          %389 = vst [vmem:[#allocation3] sm:$0xff] 0.0
        $region72: #{ptb_lstm_forward.1} parent=43 // pred_fallthru
          _
        %v390 = vld [vmem:[%s337] sm:$0xff]
        %v391 = vld [vmem:[%s337 + $0x8] sm:$0xff]
        %v392 = vld [vmem:[%s337 + $0x10] sm:$0xff]
        %v393 = vld [vmem:[%s337 + $0x18] sm:$0xff]
        %v394 = vld [vmem:[#allocation2] sm:$0xff]
        %v395 = vpack.c.bf16 %v394, %v394
        %v396 = vld [vmem:[#allocation11] sm:$0xff]
        %v397 = vld [vmem:[#allocation11 + $0x8] sm:$0xff]
        %v398 = vld [vmem:[#allocation11 + $0x10] sm:$0xff]
        %v399 = vld [vmem:[#allocation11 + $0x18] sm:$0xff]
        %v400 = vld [vmem:[#allocation11 + $0x20] sm:$0xff]
        %v401 = vld [vmem:[#allocation11 + $0x28] sm:$0xff]
        %v402 = vld [vmem:[#allocation11 + $0x30] sm:$0xff]
        %v403 = vld [vmem:[#allocation11 + $0x38] sm:$0xff]
        %v404 = vld [vmem:[#allocation11 + $0x40] sm:$0xff]
        %v405 = vld [vmem:[#allocation11 + $0x48] sm:$0xff]
        %v406 = vld [vmem:[#allocation11 + $0x50] sm:$0xff]
        %v407 = vld [vmem:[#allocation11 + $0x58] sm:$0xff]
        %v408 = vld [vmem:[#allocation11 + $0x60] sm:$0xff]
        %v409 = vld [vmem:[#allocation11 + $0x68] sm:$0xff]
        %v410 = vld [vmem:[#allocation11 + $0x70] sm:$0xff]
        %v411 = vld [vmem:[#allocation11 + $0x78] sm:$0xff]
        %v412 = vld [vmem:[#allocation11 + $0x80] sm:$0xff]
        %v413 = vld [vmem:[#allocation11 + $0x88] sm:$0xff]
        %v414 = vld [vmem:[#allocation11 + $0x90] sm:$0xff]
        %v415 = vld [vmem:[#allocation11 + $0x98] sm:$0xff]
        %v416 = vld [vmem:[#allocation11 + $0xa0] sm:$0xff]
        %v417 = vld [vmem:[#allocation11 + $0xa8] sm:$0xff]
        %v418 = vld [vmem:[#allocation11 + $0xb0] sm:$0xff]
        %v419 = vld [vmem:[#allocation11 + $0xb8] sm:$0xff]
        %v420 = vld [vmem:[#allocation11 + $0xc0] sm:$0xff]
        %v421 = vld [vmem:[#allocation11 + $0xc8] sm:$0xff]
        %v422 = vld [vmem:[#allocation11 + $0xd0] sm:$0xff]
        %v423 = vld [vmem:[#allocation11 + $0xd8] sm:$0xff]
        %v424 = vld [vmem:[#allocation11 + $0xe0] sm:$0xff]
        %v425 = vld [vmem:[#allocation11 + $0xe8] sm:$0xff]
        %v426 = vld [vmem:[#allocation11 + $0xf0] sm:$0xff]
        %v427 = vld [vmem:[#allocation11 + $0xf8] sm:$0xff]
        %v460 = vunpack.c.l.b16 %v396
        %v461 = vunpack.c.h.b16 %v396
        %v462 = vunpack.c.l.b16 %v397
        %v463 = vunpack.c.h.b16 %v397
        %v464 = vunpack.c.l.b16 %v398
        %v465 = vunpack.c.h.b16 %v398
        %v466 = vunpack.c.l.b16 %v399
        %v467 = vunpack.c.h.b16 %v399
        %v468 = vunpack.c.l.b16 %v400
        %v469 = vunpack.c.h.b16 %v400
        %v470 = vunpack.c.l.b16 %v401
        %v471 = vunpack.c.h.b16 %v401
        %v472 = vunpack.c.l.b16 %v402
        %v473 = vunpack.c.h.b16 %v402
        %v474 = vunpack.c.l.b16 %v403
        %v475 = vunpack.c.h.b16 %v403
        %v476 = vunpack.c.l.b16 %v404
        %v477 = vunpack.c.h.b16 %v404
        %v478 = vunpack.c.l.b16 %v405
        %v479 = vunpack.c.h.b16 %v405
        %v480 = vunpack.c.l.b16 %v406
        %v481 = vunpack.c.h.b16 %v406
        %v482 = vunpack.c.l.b16 %v407
        %v483 = vunpack.c.h.b16 %v407
        %v484 = vunpack.c.l.b16 %v408
        %v485 = vunpack.c.h.b16 %v408
        %v486 = vunpack.c.l.b16 %v409
        %v487 = vunpack.c.h.b16 %v409
        %v488 = vunpack.c.l.b16 %v410
        %v489 = vunpack.c.h.b16 %v410
        %v490 = vunpack.c.l.b16 %v411
        %v491 = vunpack.c.h.b16 %v411
        %v492 = vunpack.c.l.b16 %v412
        %v493 = vunpack.c.h.b16 %v412
        %v494 = vunpack.c.l.b16 %v413
        %v495 = vunpack.c.h.b16 %v413
        %v496 = vunpack.c.l.b16 %v414
        %v497 = vunpack.c.h.b16 %v414
        %v498 = vunpack.c.l.b16 %v415
        %v499 = vunpack.c.h.b16 %v415
        %v500 = vunpack.c.l.b16 %v416
        %v501 = vunpack.c.h.b16 %v416
        %v502 = vunpack.c.l.b16 %v417
        %v503 = vunpack.c.h.b16 %v417
        %v504 = vunpack.c.l.b16 %v418
        %v505 = vunpack.c.h.b16 %v418
        %v506 = vunpack.c.l.b16 %v419
        %v507 = vunpack.c.h.b16 %v419
        %v508 = vunpack.c.l.b16 %v420
        %v509 = vunpack.c.h.b16 %v420
        %v510 = vunpack.c.l.b16 %v421
        %v511 = vunpack.c.h.b16 %v421
        %v512 = vunpack.c.l.b16 %v422
        %v513 = vunpack.c.h.b16 %v422
        %v514 = vunpack.c.l.b16 %v423
        %v515 = vunpack.c.h.b16 %v423
        %v516 = vunpack.c.l.b16 %v424
        %v517 = vunpack.c.h.b16 %v424
        %v518 = vunpack.c.l.b16 %v425
        %v519 = vunpack.c.h.b16 %v425
        %v520 = vunpack.c.l.b16 %v426
        %v521 = vunpack.c.h.b16 %v426
        %v522 = vunpack.c.l.b16 %v427
        %v523 = vunpack.c.h.b16 %v427
        %v524 = vpack.c.b16 %v464, %v460
        %v525 = vpack.c.b16 %v465, %v461
        %v526 = vpack.c.b16 %v466, %v462
        %v527 = vpack.c.b16 %v467, %v463
        %v528 = vpack.c.b16 %v472, %v468
        %v529 = vpack.c.b16 %v473, %v469
        %v530 = vpack.c.b16 %v474, %v470
        %v531 = vpack.c.b16 %v475, %v471
        %v532 = vpack.c.b16 %v480, %v476
        %v533 = vpack.c.b16 %v481, %v477
        %v534 = vpack.c.b16 %v482, %v478
        %v535 = vpack.c.b16 %v483, %v479
        %v536 = vpack.c.b16 %v488, %v484
        %v537 = vpack.c.b16 %v489, %v485
        %v538 = vpack.c.b16 %v490, %v486
        %v539 = vpack.c.b16 %v491, %v487
        %v540 = vpack.c.b16 %v496, %v492
        %v541 = vpack.c.b16 %v497, %v493
        %v542 = vpack.c.b16 %v498, %v494
        %v543 = vpack.c.b16 %v499, %v495
        %v544 = vpack.c.b16 %v504, %v500
        %v545 = vpack.c.b16 %v505, %v501
        %v546 = vpack.c.b16 %v506, %v502
        %v547 = vpack.c.b16 %v507, %v503
        %v548 = vpack.c.b16 %v512, %v508
        %v549 = vpack.c.b16 %v513, %v509
        %v550 = vpack.c.b16 %v514, %v510
        %v551 = vpack.c.b16 %v515, %v511
        %v552 = vpack.c.b16 %v520, %v516
        %v553 = vpack.c.b16 %v521, %v517
        %v554 = vpack.c.b16 %v522, %v518
        %v555 = vpack.c.b16 %v523, %v519
        %588 = vmatprep.subr.bf16.mxu0 %v525
        %589 = vmatpush1.bf16.msra.mxu0 %v524
        %590 = vmatprep.subr.bf16.mxu0 %v529
        %591 = vmatpush1.bf16.msra.mxu0 %v528
        %592 = vmatprep.subr.bf16.mxu0 %v533
        %593 = vmatpush1.bf16.msra.mxu0 %v532
        %594 = vmatprep.subr.bf16.mxu0 %v537
        %595 = vmatpush1.bf16.msra.mxu0 %v536
        %596 = vmatprep.subr.bf16.mxu0 %v541
        %597 = vmatpush1.bf16.msra.mxu0 %v540
        %598 = vmatprep.subr.bf16.mxu0 %v545
        %599 = vmatpush1.bf16.msra.mxu0 %v544
        %600 = vmatprep.subr.bf16.mxu0 %v549
        %601 = vmatpush1.bf16.msra.mxu0 %v548
        %602 = vmatprep.subr.bf16.mxu0 %v553
        %603 = vmatpush1.bf16.msra.mxu0 %v552
        %604 = vmatprep.subr.bf16.mxu0 0
        %605 = vmatpush1.bf16.msra.mxu0 0
        %606 = vmatprep.subr.bf16.mxu0 0
        %607 = vmatpush1.bf16.msra.mxu0 0
        %608 = vmatprep.subr.bf16.mxu0 0
        %609 = vmatpush1.bf16.msra.mxu0 0
        %610 = vmatprep.subr.bf16.mxu0 0
        %611 = vmatpush1.bf16.msra.mxu0 0
        %612 = vmatprep.subr.bf16.mxu0 0
        %613 = vmatpush1.bf16.msra.mxu0 0
        %614 = vmatprep.subr.bf16.mxu0 0
        %615 = vmatpush1.bf16.msra.mxu0 0
        %616 = vmatprep.subr.bf16.mxu0 0
        %617 = vmatpush1.bf16.msra.mxu0 0
        %618 = vmatprep.subr.bf16.mxu0 0
        %619 = vmatpush1.bf16.msra.mxu0 0
        %620 = vmatprep.mubr.bf16.mxu0 0
        %621 = vmatmul.mubr.bf16.gmra.mrb[0].mxu0 %v395
        %v622 = vpop.f32.mrb[0].mxu0
        %v623 = vadd.f32 0.0, %v622
        %v624 = vpop.f32.mrb[0].mxu0
        %v625 = vadd.f32 0.0, %v624
        %v626 = vpop.f32.mrb[0].mxu0
        %v627 = vpop.f32.mrb[0].mxu0
        %628 = vdwg.mxu0
        %629 = vmatprep.subr.bf16.mxu0 %v527
        %630 = vmatpush1.bf16.msra.mxu0 %v526
        %631 = vmatprep.subr.bf16.mxu0 %v531
        %632 = vmatpush1.bf16.msra.mxu0 %v530
        %633 = vmatprep.subr.bf16.mxu0 %v535
        %634 = vmatpush1.bf16.msra.mxu0 %v534
        %635 = vmatprep.subr.bf16.mxu0 %v539
        %636 = vmatpush1.bf16.msra.mxu0 %v538
        %637 = vmatprep.subr.bf16.mxu0 %v543
        %638 = vmatpush1.bf16.msra.mxu0 %v542
        %639 = vmatprep.subr.bf16.mxu0 %v547
        %640 = vmatpush1.bf16.msra.mxu0 %v546
        %641 = vmatprep.subr.bf16.mxu0 %v551
        %642 = vmatpush1.bf16.msra.mxu0 %v550
        %643 = vmatprep.subr.bf16.mxu0 %v555
        %644 = vmatpush1.bf16.msra.mxu0 %v554
        %645 = vmatprep.subr.bf16.mxu0 0
        %646 = vmatpush1.bf16.msra.mxu0 0
        %647 = vmatprep.subr.bf16.mxu0 0
        %648 = vmatpush1.bf16.msra.mxu0 0
        %649 = vmatprep.subr.bf16.mxu0 0
        %650 = vmatpush1.bf16.msra.mxu0 0
        %651 = vmatprep.subr.bf16.mxu0 0
        %652 = vmatpush1.bf16.msra.mxu0 0
        %653 = vmatprep.subr.bf16.mxu0 0
        %654 = vmatpush1.bf16.msra.mxu0 0
        %655 = vmatprep.subr.bf16.mxu0 0
        %656 = vmatpush1.bf16.msra.mxu0 0
        %657 = vmatprep.subr.bf16.mxu0 0
        %658 = vmatpush1.bf16.msra.mxu0 0
        %659 = vmatprep.subr.bf16.mxu0 0
        %660 = vmatpush1.bf16.msra.mxu0 0
        %661 = vmatprep.mubr.bf16.mxu0 0
        %662 = vmatmul.mubr.bf16.gmra.mrb[0].mxu0 %v395
        %v663 = vpop.f32.mrb[0].mxu0
        %v664 = vadd.f32 0.0, %v663
        %v665 = vpop.f32.mrb[0].mxu0
        %v666 = vadd.f32 0.0, %v665
        %v667 = vpop.f32.mrb[0].mxu0
        %v668 = vpop.f32.mrb[0].mxu0
        %669 = vdwg.mxu0
        %v670 = vadd.f32 %v390, %v623
        %v671 = vadd.f32 %v391, %v625
        %v672 = vadd.f32 %v392, %v664
        %v673 = vadd.f32 %v393, %v666
        %s674 = sld [smem:[#allocation4]]
        %v675 = vstv %s674
        %vm676 = vcmp.ge.f32.partialorder %v670, %v675
        %vm677 = vcmp.ge.f32.partialorder %v671, %v675
        %vm678 = vcmp.ge.f32.partialorder %v672, %v675
        %v679 = vsel %vm676, 1, 0
        %v680 = vsel %vm677, 1, 0
        %v681 = vsel %vm678, 1, 0
        %v682 = vcvt.s32.f32 %v679
        %v683 = vcvt.s32.f32 %v680
        %v684 = vcvt.s32.f32 %v681
        %v685 = vadd.f32 %v682, 0.0
        %v686 = vadd.f32 %v683, 0.0
        %v687 = vadd.f32 %v684, 0.0
        %s688 = sld [smem:[#allocation4 + $0x1]]
        %v689 = vstv %s688
        %vm690 = vcmp.ge.f32.partialorder %v670, %v689
        %vm691 = vcmp.ge.f32.partialorder %v671, %v689
        %vm692 = vcmp.ge.f32.partialorder %v672, %v689
        %v693 = vsel %vm690, 1, 0
        %v694 = vsel %vm691, 1, 0
        %v695 = vsel %vm692, 1, 0
        %v696 = vcvt.s32.f32 %v693
        %v697 = vcvt.s32.f32 %v694
        %v698 = vcvt.s32.f32 %v695
        %v699 = vadd.f32 %v685, %v696
        %v700 = vadd.f32 %v686, %v697
        %v701 = vadd.f32 %v687, %v698
        %s702 = sld [smem:[#allocation4 + $0x2]]
        %v703 = vstv %s702
        %vm704 = vcmp.ge.f32.partialorder %v670, %v703
        %vm705 = vcmp.ge.f32.partialorder %v671, %v703
        %vm706 = vcmp.ge.f32.partialorder %v672, %v703
        %v707 = vsel %vm704, 1, 0
        %v708 = vsel %vm705, 1, 0
        %v709 = vsel %vm706, 1, 0
        %v710 = vcvt.s32.f32 %v707
        %v711 = vcvt.s32.f32 %v708
        %v712 = vcvt.s32.f32 %v709
        %v713 = vadd.f32 %v699, %v710
        %v714 = vadd.f32 %v700, %v711
        %v715 = vadd.f32 %v701, %v712
        %s716 = sld [smem:[#allocation4 + $0x3]]
        %v717 = vstv %s716
        %vm718 = vcmp.ge.f32.partialorder %v670, %v717
        %vm719 = vcmp.ge.f32.partialorder %v671, %v717
        %vm720 = vcmp.ge.f32.partialorder %v672, %v717
        %v721 = vsel %vm718, 1, 0
        %v722 = vsel %vm719, 1, 0
        %v723 = vsel %vm720, 1, 0
        %v724 = vcvt.s32.f32 %v721
        %v725 = vcvt.s32.f32 %v722
        %v726 = vcvt.s32.f32 %v723
        %v727 = vadd.f32 %v713, %v724
        %v728 = vadd.f32 %v714, %v725
        %v729 = vadd.f32 %v715, %v726
        %s730 = sld [smem:[#allocation4 + $0x4]]
        %v731 = vstv %s730
        %vm732 = vcmp.ge.f32.partialorder %v670, %v731
        %vm733 = vcmp.ge.f32.partialorder %v671, %v731
        %vm734 = vcmp.ge.f32.partialorder %v672, %v731
        %v735 = vsel %vm732, 1, 0
        %v736 = vsel %vm733, 1, 0
        %v737 = vsel %vm734, 1, 0
        %v738 = vcvt.s32.f32 %v735
        %v739 = vcvt.s32.f32 %v736
        %v740 = vcvt.s32.f32 %v737
        %v741 = vadd.f32 %v727, %v738
        %v742 = vadd.f32 %v728, %v739
        %v743 = vadd.f32 %v729, %v740
        %s744 = sld [smem:[#allocation4 + $0x5]]
        %v745 = vstv %s744
        %vm746 = vcmp.ge.f32.partialorder %v670, %v745
        %vm747 = vcmp.ge.f32.partialorder %v671, %v745
        %vm748 = vcmp.ge.f32.partialorder %v672, %v745
        %v749 = vsel %vm746, 1, 0
        %v750 = vsel %vm747, 1, 0
        %v751 = vsel %vm748, 1, 0
        %v752 = vcvt.s32.f32 %v749
        %v753 = vcvt.s32.f32 %v750
        %v754 = vcvt.s32.f32 %v751
        %v755 = vadd.f32 %v741, %v752
        %v756 = vadd.f32 %v742, %v753
        %v757 = vadd.f32 %v743, %v754
        %s758 = sld [smem:[#allocation4 + $0x6]]
        %v759 = vstv %s758
        %vm760 = vcmp.ge.f32.partialorder %v670, %v759
        %vm761 = vcmp.ge.f32.partialorder %v671, %v759
        %vm762 = vcmp.ge.f32.partialorder %v672, %v759
        %v763 = vsel %vm760, 1, 0
        %v764 = vsel %vm761, 1, 0
        %v765 = vsel %vm762, 1, 0
        %v766 = vcvt.s32.f32 %v763
        %v767 = vcvt.s32.f32 %v764
        %v768 = vcvt.s32.f32 %v765
        %v769 = vadd.f32 %v755, %v766
        %v770 = vadd.f32 %v756, %v767
        %v771 = vadd.f32 %v757, %v768
        %s772 = sld [smem:[#allocation4 + $0x7]]
        %v773 = vstv %s772
        %vm774 = vcmp.ge.f32.partialorder %v670, %v773
        %vm775 = vcmp.ge.f32.partialorder %v671, %v773
        %vm776 = vcmp.ge.f32.partialorder %v672, %v773
        %v777 = vsel %vm774, 1, 0
        %v778 = vsel %vm775, 1, 0
        %v779 = vsel %vm776, 1, 0
        %v780 = vcvt.s32.f32 %v777
        %v781 = vcvt.s32.f32 %v778
        %v782 = vcvt.s32.f32 %v779
        %v783 = vadd.f32 %v769, %v780
        %v784 = vadd.f32 %v770, %v781
        %v785 = vadd.f32 %v771, %v782
        %s786 = sld [smem:[#allocation4 + $0x8]]
        %v787 = vstv %s786
        %vm788 = vcmp.ge.f32.partialorder %v670, %v787
        %vm789 = vcmp.ge.f32.partialorder %v671, %v787
        %vm790 = vcmp.ge.f32.partialorder %v672, %v787
        %v791 = vsel %vm788, 1, 0
        %v792 = vsel %vm789, 1, 0
        %v793 = vsel %vm790, 1, 0
        %v794 = vcvt.s32.f32 %v791
        %v795 = vcvt.s32.f32 %v792
        %v796 = vcvt.s32.f32 %v793
        %v797 = vadd.f32 %v783, %v794
        %v798 = vadd.f32 %v784, %v795
        %v799 = vadd.f32 %v785, %v796
        %s800 = sld [smem:[#allocation4 + $0x9]]
        %v801 = vstv %s800
        %vm802 = vcmp.ge.f32.partialorder %v670, %v801
        %vm803 = vcmp.ge.f32.partialorder %v671, %v801
        %vm804 = vcmp.ge.f32.partialorder %v672, %v801
        %v805 = vsel %vm802, 1, 0
        %v806 = vsel %vm803, 1, 0
        %v807 = vsel %vm804, 1, 0
        %v808 = vcvt.s32.f32 %v805
        %v809 = vcvt.s32.f32 %v806
        %v810 = vcvt.s32.f32 %v807
        %v811 = vadd.f32 %v797, %v808
        %v812 = vadd.f32 %v798, %v809
        %v813 = vadd.f32 %v799, %v810
        %s814 = sld [smem:[#allocation4 + $0xa]]
        %v815 = vstv %s814
        %vm816 = vcmp.ge.f32.partialorder %v670, %v815
        %vm817 = vcmp.ge.f32.partialorder %v671, %v815
        %vm818 = vcmp.ge.f32.partialorder %v672, %v815
        %v819 = vsel %vm816, 1, 0
        %v820 = vsel %vm817, 1, 0
        %v821 = vsel %vm818, 1, 0
        %v822 = vcvt.s32.f32 %v819
        %v823 = vcvt.s32.f32 %v820
        %v824 = vcvt.s32.f32 %v821
        %v825 = vadd.f32 %v811, %v822
        %v826 = vadd.f32 %v812, %v823
        %v827 = vadd.f32 %v813, %v824
        %s828 = sld [smem:[#allocation4 + $0xb]]
        %v829 = vstv %s828
        %vm830 = vcmp.ge.f32.partialorder %v670, %v829
        %vm831 = vcmp.ge.f32.partialorder %v671, %v829
        %vm832 = vcmp.ge.f32.partialorder %v672, %v829
        %v833 = vsel %vm830, 1, 0
        %v834 = vsel %vm831, 1, 0
        %v835 = vsel %vm832, 1, 0
        %v836 = vcvt.s32.f32 %v833
        %v837 = vcvt.s32.f32 %v834
        %v838 = vcvt.s32.f32 %v835
        %v839 = vadd.f32 %v825, %v836
        %v840 = vadd.f32 %v826, %v837
        %v841 = vadd.f32 %v827, %v838
        %s842 = sld [smem:[#allocation4 + $0xc]]
        %v843 = vstv %s842
        %vm844 = vcmp.ge.f32.partialorder %v670, %v843
        %vm845 = vcmp.ge.f32.partialorder %v671, %v843
        %vm846 = vcmp.ge.f32.partialorder %v672, %v843
        %v847 = vsel %vm844, 1, 0
        %v848 = vsel %vm845, 1, 0
        %v849 = vsel %vm846, 1, 0
        %v850 = vcvt.s32.f32 %v847
        %v851 = vcvt.s32.f32 %v848
        %v852 = vcvt.s32.f32 %v849
        %v853 = vadd.f32 %v839, %v850
        %v854 = vadd.f32 %v840, %v851
        %v855 = vadd.f32 %v841, %v852
        %s856 = sld [smem:[#allocation4 + $0xd]]
        %v857 = vstv %s856
        %vm858 = vcmp.ge.f32.partialorder %v670, %v857
        %vm859 = vcmp.ge.f32.partialorder %v671, %v857
        %vm860 = vcmp.ge.f32.partialorder %v672, %v857
        %v861 = vsel %vm858, 1, 0
        %v862 = vsel %vm859, 1, 0
        %v863 = vsel %vm860, 1, 0
        %v864 = vcvt.s32.f32 %v861
        %v865 = vcvt.s32.f32 %v862
        %v866 = vcvt.s32.f32 %v863
        %v867 = vadd.f32 %v853, %v864
        %v868 = vadd.f32 %v854, %v865
        %v869 = vadd.f32 %v855, %v866
        %s870 = sld [smem:[#allocation4 + $0xe]]
        %v871 = vstv %s870
        %vm872 = vcmp.ge.f32.partialorder %v670, %v871
        %vm873 = vcmp.ge.f32.partialorder %v671, %v871
        %vm874 = vcmp.ge.f32.partialorder %v672, %v871
        %v875 = vsel %vm872, 1, 0
        %v876 = vsel %vm873, 1, 0
        %v877 = vsel %vm874, 1, 0
        %v878 = vcvt.s32.f32 %v875
        %v879 = vcvt.s32.f32 %v876
        %v880 = vcvt.s32.f32 %v877
        %v881 = vadd.f32 %v867, %v878
        %v882 = vadd.f32 %v868, %v879
        %v883 = vadd.f32 %v869, %v880
        %s884 = sld [smem:[#allocation4 + $0xf]]
        %v885 = vstv %s884
        %vm886 = vcmp.ge.f32.partialorder %v670, %v885
        %vm887 = vcmp.ge.f32.partialorder %v671, %v885
        %vm888 = vcmp.ge.f32.partialorder %v672, %v885
        %v889 = vsel %vm886, 1, 0
        %v890 = vsel %vm887, 1, 0
        %v891 = vsel %vm888, 1, 0
        %v892 = vcvt.s32.f32 %v889
        %v893 = vcvt.s32.f32 %v890
        %v894 = vcvt.s32.f32 %v891
        %v895 = vadd.f32 %v881, %v892
        %v896 = vadd.f32 %v882, %v893
        %v897 = vadd.f32 %v883, %v894
        %s898 = sld [smem:[#allocation4 + $0x10]]
        %v899 = vstv %s898
        %vm900 = vcmp.ge.f32.partialorder %v670, %v899
        %vm901 = vcmp.ge.f32.partialorder %v671, %v899
        %vm902 = vcmp.ge.f32.partialorder %v672, %v899
        %v903 = vsel %vm900, 1, 0
        %v904 = vsel %vm901, 1, 0
        %v905 = vsel %vm902, 1, 0
        %v906 = vcvt.s32.f32 %v903
        %v907 = vcvt.s32.f32 %v904
        %v908 = vcvt.s32.f32 %v905
        %v909 = vadd.f32 %v895, %v906
        %v910 = vadd.f32 %v896, %v907
        %v911 = vadd.f32 %v897, %v908
        %s912 = sld [smem:[#allocation4 + $0x11]]
        %v913 = vstv %s912
        %vm914 = vcmp.ge.f32.partialorder %v670, %v913
        %vm915 = vcmp.ge.f32.partialorder %v671, %v913
        %vm916 = vcmp.ge.f32.partialorder %v672, %v913
        %v917 = vsel %vm914, 1, 0
        %v918 = vsel %vm915, 1, 0
        %v919 = vsel %vm916, 1, 0
        %v920 = vcvt.s32.f32 %v917
        %v921 = vcvt.s32.f32 %v918
        %v922 = vcvt.s32.f32 %v919
        %v923 = vadd.f32 %v909, %v920
        %v924 = vadd.f32 %v910, %v921
        %v925 = vadd.f32 %v911, %v922
        %s926 = sld [smem:[#allocation4 + $0x12]]
        %v927 = vstv %s926
        %vm928 = vcmp.ge.f32.partialorder %v670, %v927
        %vm929 = vcmp.ge.f32.partialorder %v671, %v927
        %vm930 = vcmp.ge.f32.partialorder %v672, %v927
        %v931 = vsel %vm928, 1, 0
        %v932 = vsel %vm929, 1, 0
        %v933 = vsel %vm930, 1, 0
        %v934 = vcvt.s32.f32 %v931
        %v935 = vcvt.s32.f32 %v932
        %v936 = vcvt.s32.f32 %v933
        %v937 = vadd.f32 %v923, %v934
        %v938 = vadd.f32 %v924, %v935
        %v939 = vadd.f32 %v925, %v936
        %s940 = sld [smem:[#allocation4 + $0x13]]
        %v941 = vstv %s940
        %vm942 = vcmp.ge.f32.partialorder %v670, %v941
        %vm943 = vcmp.ge.f32.partialorder %v671, %v941
        %vm944 = vcmp.ge.f32.partialorder %v672, %v941
        %v945 = vsel %vm942, 1, 0
        %v946 = vsel %vm943, 1, 0
        %v947 = vsel %vm944, 1, 0
        %v948 = vcvt.s32.f32 %v945
        %v949 = vcvt.s32.f32 %v946
        %v950 = vcvt.s32.f32 %v947
        %v951 = vadd.f32 %v937, %v948
        %v952 = vadd.f32 %v938, %v949
        %v953 = vadd.f32 %v939, %v950
        %s954 = sld [smem:[#allocation4 + $0x14]]
        %v955 = vstv %s954
        %vm956 = vcmp.ge.f32.partialorder %v670, %v955
        %vm957 = vcmp.ge.f32.partialorder %v671, %v955
        %vm958 = vcmp.ge.f32.partialorder %v672, %v955
        %v959 = vsel %vm956, 1, 0
        %v960 = vsel %vm957, 1, 0
        %v961 = vsel %vm958, 1, 0
        %v962 = vcvt.s32.f32 %v959
        %v963 = vcvt.s32.f32 %v960
        %v964 = vcvt.s32.f32 %v961
        %v965 = vadd.f32 %v951, %v962
        %v966 = vadd.f32 %v952, %v963
        %v967 = vadd.f32 %v953, %v964
        %s968 = sld [smem:[#allocation4 + $0x15]]
        %v969 = vstv %s968
        %vm970 = vcmp.ge.f32.partialorder %v670, %v969
        %vm971 = vcmp.ge.f32.partialorder %v671, %v969
        %vm972 = vcmp.ge.f32.partialorder %v672, %v969
        %v973 = vsel %vm970, 1, 0
        %v974 = vsel %vm971, 1, 0
        %v975 = vsel %vm972, 1, 0
        %v976 = vcvt.s32.f32 %v973
        %v977 = vcvt.s32.f32 %v974
        %v978 = vcvt.s32.f32 %v975
        %v979 = vadd.f32 %v965, %v976
        %v980 = vadd.f32 %v966, %v977
        %v981 = vadd.f32 %v967, %v978
        %s982 = sld [smem:[#allocation4 + $0x16]]
        %v983 = vstv %s982
        %vm984 = vcmp.ge.f32.partialorder %v670, %v983
        %vm985 = vcmp.ge.f32.partialorder %v671, %v983
        %vm986 = vcmp.ge.f32.partialorder %v672, %v983
        %v987 = vsel %vm984, 1, 0
        %v988 = vsel %vm985, 1, 0
        %v989 = vsel %vm986, 1, 0
        %v990 = vcvt.s32.f32 %v987
        %v991 = vcvt.s32.f32 %v988
        %v992 = vcvt.s32.f32 %v989
        %v993 = vadd.f32 %v979, %v990
        %v994 = vadd.f32 %v980, %v991
        %v995 = vadd.f32 %v981, %v992
        %s996 = sld [smem:[#allocation4 + $0x17]]
        %v997 = vstv %s996
        %vm998 = vcmp.ge.f32.partialorder %v670, %v997
        %vm999 = vcmp.ge.f32.partialorder %v671, %v997
        %vm1000 = vcmp.ge.f32.partialorder %v672, %v997
        %v1001 = vsel %vm998, 1, 0
        %v1002 = vsel %vm999, 1, 0
        %v1003 = vsel %vm1000, 1, 0
        %v1004 = vcvt.s32.f32 %v1001
        %v1005 = vcvt.s32.f32 %v1002
        %v1006 = vcvt.s32.f32 %v1003
        %v1007 = vadd.f32 %v993, %v1004
        %v1008 = vadd.f32 %v994, %v1005
        %v1009 = vadd.f32 %v995, %v1006
        %s1010 = sld [smem:[#allocation4 + $0x18]]
        %v1011 = vstv %s1010
        %vm1012 = vcmp.ge.f32.partialorder %v670, %v1011
        %vm1013 = vcmp.ge.f32.partialorder %v671, %v1011
        %vm1014 = vcmp.ge.f32.partialorder %v672, %v1011
        %v1015 = vsel %vm1012, 1, 0
        %v1016 = vsel %vm1013, 1, 0
        %v1017 = vsel %vm1014, 1, 0
        %v1018 = vcvt.s32.f32 %v1015
        %v1019 = vcvt.s32.f32 %v1016
        %v1020 = vcvt.s32.f32 %v1017
        %v1021 = vadd.f32 %v1007, %v1018
        %v1022 = vadd.f32 %v1008, %v1019
        %v1023 = vadd.f32 %v1009, %v1020
        %s1024 = sld [smem:[#allocation4 + $0x19]]
        %v1025 = vstv %s1024
        %vm1026 = vcmp.ge.f32.partialorder %v670, %v1025
        %vm1027 = vcmp.ge.f32.partialorder %v671, %v1025
        %vm1028 = vcmp.ge.f32.partialorder %v672, %v1025
        %v1029 = vsel %vm1026, 1, 0
        %v1030 = vsel %vm1027, 1, 0
        %v1031 = vsel %vm1028, 1, 0
        %v1032 = vcvt.s32.f32 %v1029
        %v1033 = vcvt.s32.f32 %v1030
        %v1034 = vcvt.s32.f32 %v1031
        %v1035 = vadd.f32 %v1021, %v1032
        %v1036 = vadd.f32 %v1022, %v1033
        %v1037 = vadd.f32 %v1023, %v1034
        %s1038 = sld [smem:[#allocation4 + $0x1a]]
        %v1039 = vstv %s1038
        %vm1040 = vcmp.ge.f32.partialorder %v670, %v1039
        %vm1041 = vcmp.ge.f32.partialorder %v671, %v1039
        %vm1042 = vcmp.ge.f32.partialorder %v672, %v1039
        %v1043 = vsel %vm1040, 1, 0
        %v1044 = vsel %vm1041, 1, 0
        %v1045 = vsel %vm1042, 1, 0
        %v1046 = vcvt.s32.f32 %v1043
        %v1047 = vcvt.s32.f32 %v1044
        %v1048 = vcvt.s32.f32 %v1045
        %v1049 = vadd.f32 %v1035, %v1046
        %v1050 = vadd.f32 %v1036, %v1047
        %v1051 = vadd.f32 %v1037, %v1048
        %s1052 = sld [smem:[#allocation4 + $0x1b]]
        %v1053 = vstv %s1052
        %vm1054 = vcmp.ge.f32.partialorder %v670, %v1053
        %vm1055 = vcmp.ge.f32.partialorder %v671, %v1053
        %vm1056 = vcmp.ge.f32.partialorder %v672, %v1053
        %v1057 = vsel %vm1054, 1, 0
        %v1058 = vsel %vm1055, 1, 0
        %v1059 = vsel %vm1056, 1, 0
        %v1060 = vcvt.s32.f32 %v1057
        %v1061 = vcvt.s32.f32 %v1058
        %v1062 = vcvt.s32.f32 %v1059
        %v1063 = vadd.f32 %v1049, %v1060
        %v1064 = vadd.f32 %v1050, %v1061
        %v1065 = vadd.f32 %v1051, %v1062
        %s1066 = sld [smem:[#allocation4 + $0x1c]]
        %v1067 = vstv %s1066
        %vm1068 = vcmp.ge.f32.partialorder %v670, %v1067
        %vm1069 = vcmp.ge.f32.partialorder %v671, %v1067
        %vm1070 = vcmp.ge.f32.partialorder %v672, %v1067
        %v1071 = vsel %vm1068, 1, 0
        %v1072 = vsel %vm1069, 1, 0
        %v1073 = vsel %vm1070, 1, 0
        %v1074 = vcvt.s32.f32 %v1071
        %v1075 = vcvt.s32.f32 %v1072
        %v1076 = vcvt.s32.f32 %v1073
        %v1077 = vadd.f32 %v1063, %v1074
        %v1078 = vadd.f32 %v1064, %v1075
        %v1079 = vadd.f32 %v1065, %v1076
        %s1080 = sld [smem:[#allocation4 + $0x1d]]
        %v1081 = vstv %s1080
        %vm1082 = vcmp.ge.f32.partialorder %v670, %v1081
        %vm1083 = vcmp.ge.f32.partialorder %v671, %v1081
        %vm1084 = vcmp.ge.f32.partialorder %v672, %v1081
        %v1085 = vsel %vm1082, 1, 0
        %v1086 = vsel %vm1083, 1, 0
        %v1087 = vsel %vm1084, 1, 0
        %v1088 = vcvt.s32.f32 %v1085
        %v1089 = vcvt.s32.f32 %v1086
        %v1090 = vcvt.s32.f32 %v1087
        %v1091 = vadd.f32 %v1077, %v1088
        %v1092 = vadd.f32 %v1078, %v1089
        %v1093 = vadd.f32 %v1079, %v1090
        %s1094 = sld [smem:[#allocation4 + $0x1e]]
        %v1095 = vstv %s1094
        %vm1096 = vcmp.ge.f32.partialorder %v670, %v1095
        %vm1097 = vcmp.ge.f32.partialorder %v671, %v1095
        %vm1098 = vcmp.ge.f32.partialorder %v672, %v1095
        %v1099 = vsel %vm1096, 1, 0
        %v1100 = vsel %vm1097, 1, 0
        %v1101 = vsel %vm1098, 1, 0
        %v1102 = vcvt.s32.f32 %v1099
        %v1103 = vcvt.s32.f32 %v1100
        %v1104 = vcvt.s32.f32 %v1101
        %v1105 = vadd.f32 %v1091, %v1102
        %v1106 = vadd.f32 %v1092, %v1103
        %v1107 = vadd.f32 %v1093, %v1104
        %v1108 = vmul.f32 %v1105, 0.029411765
        %v1109 = vmul.f32 %v1106, 0.029411765
        %v1110 = vmul.f32 %v1107, 0.029411765
        %s1111 = sld [smem:[#allocation8]]
        %v1112 = vstv %s1111
        %vm1113 = vcmp.ge.f32.partialorder %v673, %v1112
        %v1114 = vsel %vm1113, 1, 0
        %v1115 = vcvt.s32.f32 %v1114
        %v1116 = vadd.f32 %v1115, 0.0
        %s1117 = sld [smem:[#allocation8 + $0x1]]
        %v1118 = vstv %s1117
        %vm1119 = vcmp.ge.f32.partialorder %v673, %v1118
        %v1120 = vsel %vm1119, 1, 0
        %v1121 = vcvt.s32.f32 %v1120
        %v1122 = vadd.f32 %v1116, %v1121
        %s1123 = sld [smem:[#allocation8 + $0x2]]
        %v1124 = vstv %s1123
        %vm1125 = vcmp.ge.f32.partialorder %v673, %v1124
        %v1126 = vsel %vm1125, 1, 0
        %v1127 = vcvt.s32.f32 %v1126
        %v1128 = vadd.f32 %v1122, %v1127
        %s1129 = sld [smem:[#allocation8 + $0x3]]
        %v1130 = vstv %s1129
        %vm1131 = vcmp.ge.f32.partialorder %v673, %v1130
        %v1132 = vsel %vm1131, 1, 0
        %v1133 = vcvt.s32.f32 %v1132
        %v1134 = vadd.f32 %v1128, %v1133
        %s1135 = sld [smem:[#allocation8 + $0x4]]
        %v1136 = vstv %s1135
        %vm1137 = vcmp.ge.f32.partialorder %v673, %v1136
        %v1138 = vsel %vm1137, 1, 0
        %v1139 = vcvt.s32.f32 %v1138
        %v1140 = vadd.f32 %v1134, %v1139
        %s1141 = sld [smem:[#allocation8 + $0x5]]
        %v1142 = vstv %s1141
        %vm1143 = vcmp.ge.f32.partialorder %v673, %v1142
        %v1144 = vsel %vm1143, 1, 0
        %v1145 = vcvt.s32.f32 %v1144
        %v1146 = vadd.f32 %v1140, %v1145
        %s1147 = sld [smem:[#allocation8 + $0x6]]
        %v1148 = vstv %s1147
        %vm1149 = vcmp.ge.f32.partialorder %v673, %v1148
        %v1150 = vsel %vm1149, 1, 0
        %v1151 = vcvt.s32.f32 %v1150
        %v1152 = vadd.f32 %v1146, %v1151
        %s1153 = sld [smem:[#allocation8 + $0x7]]
        %v1154 = vstv %s1153
        %vm1155 = vcmp.ge.f32.partialorder %v673, %v1154
        %v1156 = vsel %vm1155, 1, 0
        %v1157 = vcvt.s32.f32 %v1156
        %v1158 = vadd.f32 %v1152, %v1157
        %s1159 = sld [smem:[#allocation8 + $0x8]]
        %v1160 = vstv %s1159
        %vm1161 = vcmp.ge.f32.partialorder %v673, %v1160
        %v1162 = vsel %vm1161, 1, 0
        %v1163 = vcvt.s32.f32 %v1162
        %v1164 = vadd.f32 %v1158, %v1163
        %s1165 = sld [smem:[#allocation8 + $0x9]]
        %v1166 = vstv %s1165
        %vm1167 = vcmp.ge.f32.partialorder %v673, %v1166
        %v1168 = vsel %vm1167, 1, 0
        %v1169 = vcvt.s32.f32 %v1168
        %v1170 = vadd.f32 %v1164, %v1169
        %s1171 = sld [smem:[#allocation8 + $0xa]]
        %v1172 = vstv %s1171
        %vm1173 = vcmp.ge.f32.partialorder %v673, %v1172
        %v1174 = vsel %vm1173, 1, 0
        %v1175 = vcvt.s32.f32 %v1174
        %v1176 = vadd.f32 %v1170, %v1175
        %s1177 = sld [smem:[#allocation8 + $0xb]]
        %v1178 = vstv %s1177
        %vm1179 = vcmp.ge.f32.partialorder %v673, %v1178
        %v1180 = vsel %vm1179, 1, 0
        %v1181 = vcvt.s32.f32 %v1180
        %v1182 = vadd.f32 %v1176, %v1181
        %s1183 = sld [smem:[#allocation8 + $0xc]]
        %v1184 = vstv %s1183
        %vm1185 = vcmp.ge.f32.partialorder %v673, %v1184
        %v1186 = vsel %vm1185, 1, 0
        %v1187 = vcvt.s32.f32 %v1186
        %v1188 = vadd.f32 %v1182, %v1187
        %s1189 = sld [smem:[#allocation8 + $0xd]]
        %v1190 = vstv %s1189
        %vm1191 = vcmp.ge.f32.partialorder %v673, %v1190
        %v1192 = vsel %vm1191, 1, 0
        %v1193 = vcvt.s32.f32 %v1192
        %v1194 = vadd.f32 %v1188, %v1193
        %s1195 = sld [smem:[#allocation8 + $0xe]]
        %v1196 = vstv %s1195
        %vm1197 = vcmp.ge.f32.partialorder %v673, %v1196
        %v1198 = vsel %vm1197, 1, 0
        %v1199 = vcvt.s32.f32 %v1198
        %v1200 = vadd.f32 %v1194, %v1199
        %s1201 = sld [smem:[#allocation8 + $0xf]]
        %v1202 = vstv %s1201
        %vm1203 = vcmp.ge.f32.partialorder %v673, %v1202
        %v1204 = vsel %vm1203, 1, 0
        %v1205 = vcvt.s32.f32 %v1204
        %v1206 = vadd.f32 %v1200, %v1205
        %s1207 = sld [smem:[#allocation8 + $0x10]]
        %v1208 = vstv %s1207
        %vm1209 = vcmp.ge.f32.partialorder %v673, %v1208
        %v1210 = vsel %vm1209, 1, 0
        %v1211 = vcvt.s32.f32 %v1210
        %v1212 = vadd.f32 %v1206, %v1211
        %s1213 = sld [smem:[#allocation8 + $0x11]]
        %v1214 = vstv %s1213
        %vm1215 = vcmp.ge.f32.partialorder %v673, %v1214
        %v1216 = vsel %vm1215, 1, 0
        %v1217 = vcvt.s32.f32 %v1216
        %v1218 = vadd.f32 %v1212, %v1217
        %s1219 = sld [smem:[#allocation8 + $0x12]]
        %v1220 = vstv %s1219
        %vm1221 = vcmp.ge.f32.partialorder %v673, %v1220
        %v1222 = vsel %vm1221, 1, 0
        %v1223 = vcvt.s32.f32 %v1222
        %v1224 = vadd.f32 %v1218, %v1223
        %s1225 = sld [smem:[#allocation8 + $0x13]]
        %v1226 = vstv %s1225
        %vm1227 = vcmp.ge.f32.partialorder %v673, %v1226
        %v1228 = vsel %vm1227, 1, 0
        %v1229 = vcvt.s32.f32 %v1228
        %v1230 = vadd.f32 %v1224, %v1229
        %s1231 = sld [smem:[#allocation8 + $0x14]]
        %v1232 = vstv %s1231
        %vm1233 = vcmp.ge.f32.partialorder %v673, %v1232
        %v1234 = vsel %vm1233, 1, 0
        %v1235 = vcvt.s32.f32 %v1234
        %v1236 = vadd.f32 %v1230, %v1235
        %s1237 = sld [smem:[#allocation8 + $0x15]]
        %v1238 = vstv %s1237
        %vm1239 = vcmp.ge.f32.partialorder %v673, %v1238
        %v1240 = vsel %vm1239, 1, 0
        %v1241 = vcvt.s32.f32 %v1240
        %v1242 = vadd.f32 %v1236, %v1241
        %s1243 = sld [smem:[#allocation8 + $0x16]]
        %v1244 = vstv %s1243
        %vm1245 = vcmp.ge.f32.partialorder %v673, %v1244
        %v1246 = vsel %vm1245, 1, 0
        %v1247 = vcvt.s32.f32 %v1246
        %v1248 = vadd.f32 %v1242, %v1247
        %s1249 = sld [smem:[#allocation8 + $0x17]]
        %v1250 = vstv %s1249
        %vm1251 = vcmp.ge.f32.partialorder %v673, %v1250
        %v1252 = vsel %vm1251, 1, 0
        %v1253 = vcvt.s32.f32 %v1252
        %v1254 = vadd.f32 %v1248, %v1253
        %s1255 = sld [smem:[#allocation8 + $0x18]]
        %v1256 = vstv %s1255
        %vm1257 = vcmp.ge.f32.partialorder %v673, %v1256
        %v1258 = vsel %vm1257, 1, 0
        %v1259 = vcvt.s32.f32 %v1258
        %v1260 = vadd.f32 %v1254, %v1259
        %s1261 = sld [smem:[#allocation8 + $0x19]]
        %v1262 = vstv %s1261
        %vm1263 = vcmp.ge.f32.partialorder %v673, %v1262
        %v1264 = vsel %vm1263, 1, 0
        %v1265 = vcvt.s32.f32 %v1264
        %v1266 = vadd.f32 %v1260, %v1265
        %s1267 = sld [smem:[#allocation8 + $0x1a]]
        %v1268 = vstv %s1267
        %vm1269 = vcmp.ge.f32.partialorder %v673, %v1268
        %v1270 = vsel %vm1269, 1, 0
        %v1271 = vcvt.s32.f32 %v1270
        %v1272 = vadd.f32 %v1266, %v1271
        %s1273 = sld [smem:[#allocation8 + $0x1b]]
        %v1274 = vstv %s1273
        %vm1275 = vcmp.ge.f32.partialorder %v673, %v1274
        %v1276 = vsel %vm1275, 1, 0
        %v1277 = vcvt.s32.f32 %v1276
        %v1278 = vadd.f32 %v1272, %v1277
        %s1279 = sld [smem:[#allocation8 + $0x1c]]
        %v1280 = vstv %s1279
        %vm1281 = vcmp.ge.f32.partialorder %v673, %v1280
        %v1282 = vsel %vm1281, 1, 0
        %v1283 = vcvt.s32.f32 %v1282
        %v1284 = vadd.f32 %v1278, %v1283
        %s1285 = sld [smem:[#allocation8 + $0x1d]]
        %v1286 = vstv %s1285
        %vm1287 = vcmp.ge.f32.partialorder %v673, %v1286
        %v1288 = vsel %vm1287, 1, 0
        %v1289 = vcvt.s32.f32 %v1288
        %v1290 = vadd.f32 %v1284, %v1289
        %s1291 = sld [smem:[#allocation8 + $0x1e]]
        %v1292 = vstv %s1291
        %vm1293 = vcmp.ge.f32.partialorder %v673, %v1292
        %v1294 = vsel %vm1293, 1, 0
        %v1295 = vcvt.s32.f32 %v1294
        %v1296 = vadd.f32 %v1290, %v1295
        %v1297 = vmul.f32 %v1296, 0.05882353
        %v1298 = vsub.f32 %v1297, 1.0
        %v1299 = vld [vmem:[#allocation3] sm:$0xff]
        %v1300 = vmul.f32 %v1109, %v1299
        %v1301 = vmul.f32 %v1108, %v1298
        %v1302 = vadd.f32 %v1300, %v1301
        %v1303 = vtanh.pop %v1302
        %v1304 = vmul.f32 %v1110, %v1303
        %v1305 = vpack.c.bf16 %v1304, %v1304
        %v1306 = vld [vmem:[#allocation13] sm:$0xf]
        %v1307 = vld [vmem:[#allocation13 + $0x4] sm:$0xf]
        %v1308 = vld [vmem:[#allocation13 + $0x8] sm:$0xf]
        %v1309 = vld [vmem:[#allocation13 + $0xc] sm:$0xf]
        %v1310 = vld [vmem:[#allocation13 + $0x10] sm:$0xf]
        %v1311 = vld [vmem:[#allocation13 + $0x14] sm:$0xf]
        %v1312 = vld [vmem:[#allocation13 + $0x18] sm:$0xf]
        %v1313 = vld [vmem:[#allocation13 + $0x1c] sm:$0xf]
        %v1314 = vld [vmem:[#allocation13 + $0x20] sm:$0xf]
        %v1315 = vld [vmem:[#allocation13 + $0x24] sm:$0xf]
        %v1316 = vld [vmem:[#allocation13 + $0x28] sm:$0xf]
        %v1317 = vld [vmem:[#allocation13 + $0x2c] sm:$0xf]
        %v1318 = vld [vmem:[#allocation13 + $0x30] sm:$0xf]
        %v1319 = vld [vmem:[#allocation13 + $0x34] sm:$0xf]
        %v1320 = vld [vmem:[#allocation13 + $0x38] sm:$0xf]
        %v1321 = vld [vmem:[#allocation13 + $0x3c] sm:$0xf]
        %v1322 = vld [vmem:[#allocation14] sm:$0x1]
        %v1324 = vlaneseq
        %v1325 = vshrl.u32 %v1324, 7
        %v1326 = vsub.s32 0, %v1325
        %v1327 = vrot.slane %v1322, %v1326
        %v1345 = vunpack.c.l.b16 %v1306
        %v1346 = vunpack.c.l.b16 %v1307
        %v1347 = vunpack.c.l.b16 %v1308
        %v1348 = vunpack.c.l.b16 %v1309
        %v1349 = vunpack.c.l.b16 %v1310
        %v1350 = vunpack.c.l.b16 %v1311
        %v1351 = vunpack.c.l.b16 %v1312
        %v1352 = vunpack.c.l.b16 %v1313
        %v1353 = vunpack.c.l.b16 %v1314
        %v1354 = vunpack.c.l.b16 %v1315
        %v1355 = vunpack.c.l.b16 %v1316
        %v1356 = vunpack.c.l.b16 %v1317
        %v1357 = vunpack.c.l.b16 %v1318
        %v1358 = vunpack.c.l.b16 %v1319
        %v1359 = vunpack.c.l.b16 %v1320
        %v1360 = vunpack.c.l.b16 %v1321
        %v1361 = vpack.c.b16 %v1346, %v1345
        %v1362 = vpack.c.b16 %v1348, %v1347
        %v1363 = vpack.c.b16 %v1350, %v1349
        %v1364 = vpack.c.b16 %v1352, %v1351
        %v1365 = vpack.c.b16 %v1354, %v1353
        %v1366 = vpack.c.b16 %v1356, %v1355
        %v1367 = vpack.c.b16 %v1358, %v1357
        %v1368 = vpack.c.b16 %v1360, %v1359
        %1377 = vmatprep.subr.bf16.mxu0 0
        %1378 = vmatpush1.bf16.msra.mxu0 %v1361
        %1379 = vmatprep.subr.bf16.mxu0 0
        %1380 = vmatpush1.bf16.msra.mxu0 %v1362
        %1381 = vmatprep.subr.bf16.mxu0 0
        %1382 = vmatpush1.bf16.msra.mxu0 %v1363
        %1383 = vmatprep.subr.bf16.mxu0 0
        %1384 = vmatpush1.bf16.msra.mxu0 %v1364
        %1385 = vmatprep.subr.bf16.mxu0 0
        %1386 = vmatpush1.bf16.msra.mxu0 %v1365
        %1387 = vmatprep.subr.bf16.mxu0 0
        %1388 = vmatpush1.bf16.msra.mxu0 %v1366
        %1389 = vmatprep.subr.bf16.mxu0 0
        %1390 = vmatpush1.bf16.msra.mxu0 %v1367
        %1391 = vmatprep.subr.bf16.mxu0 0
        %1392 = vmatpush1.bf16.msra.mxu0 %v1368
        %1393 = vmatprep.subr.bf16.mxu0 0
        %1394 = vmatpush1.bf16.msra.mxu0 0
        %1395 = vmatprep.subr.bf16.mxu0 0
        %1396 = vmatpush1.bf16.msra.mxu0 0
        %1397 = vmatprep.subr.bf16.mxu0 0
        %1398 = vmatpush1.bf16.msra.mxu0 0
        %1399 = vmatprep.subr.bf16.mxu0 0
        %1400 = vmatpush1.bf16.msra.mxu0 0
        %1401 = vmatprep.subr.bf16.mxu0 0
        %1402 = vmatpush1.bf16.msra.mxu0 0
        %1403 = vmatprep.subr.bf16.mxu0 0
        %1404 = vmatpush1.bf16.msra.mxu0 0
        %1405 = vmatprep.subr.bf16.mxu0 0
        %1406 = vmatpush1.bf16.msra.mxu0 0
        %1407 = vmatprep.subr.bf16.mxu0 0
        %1408 = vmatpush1.bf16.msra.mxu0 0
        %1409 = vmatprep.mubr.bf16.mxu0 0
        %1410 = vmatmul.mubr.bf16.gmra.mrb[0].mxu0 %v1305
        %v1411 = vpop.f32.mrb[0].mxu0
        %v1412 = vadd.f32 %v1327, %v1411
        %v1413 = vpop.f32.mrb[0].mxu0
        %v1414 = vpop.f32.mrb[0].mxu0
        %v1415 = vpop.f32.mrb[0].mxu0
        %1416 = vdwg.mxu0
        %1417 = vst [vmem:[#allocation3] sm:$0xff] %v1302
        %1418 = vst [vmem:[#allocation2] sm:$0xff] %v1412
        %1419 = vst [vmem:[%s378] sm:$0xff] %v1412
        %p1420 = scmp.eq.s32.totalorder %s31, 7
        // Predicated region
        $region73: #{ptb_lstm_forward.1} parent=43 // pred_check
          %p1421 = pneg %p1420
        $region74: #{ptb_lstm_forward.1} parent=43 // pred_check_branch
          %1423 = sbr.rel (%p1421) target = $region76
        $region75: #{ptb_lstm_forward.1} parent=43 // pred_region
          %1424 = vst [vmem:[#allocation17] sm:$0xff] %v1412
          %1425 = vst [vmem:[#allocation19] sm:$0xff] %v1302
        $region76: #{ptb_lstm_forward.1} parent=43 // pred_fallthru
          _
        %s1426 = sand.u32 %s170, 1
        %s1427 = scalar_lea.sflag [#allocation6], %s1426
        %s1428 = sand.u32 %s170, 1
        %s1429 = smul.addr %s1428, 8
        %s1430 = scalar_lea.vmem [#allocation16], %s1429
        // Predicated region
        $region77: #{ptb_lstm_forward.1} parent=43 // pred_check
          %p1431 = pneg %p180
        $region78: #{ptb_lstm_forward.1} parent=43 // pred_check_branch
          %1433 = sbr.rel (%p1431) target = $region80
        $region79: #{ptb_lstm_forward.1} parent=43 // pred_region
          %s1435 = ssub.s32 128, 128
          %1436 = vsyncadd %s1427, %s1435
          %s1437 = smul.addr %s31, 128
          %s1438 = scalar_lea.hbm %s6, %s1437
          %s1440 = sshll.u32 %s1430, 4
          %s1441 = int_to_ptr.vmem [resolvable:$true] %s1440
          %1443 = dma.vmem_to_hbm [thread:$0]  %s1441, 128, %s1438, %s1427
        $region80: #{ptb_lstm_forward.1} parent=43 // pred_fallthru
          _
        // Predicated region
        $region81: #{ptb_lstm_forward.1} parent=43 // pred_check
          %p1444 = pneg %p201
        $region82: #{ptb_lstm_forward.1} parent=43 // pred_check_branch
          %1446 = sbr.rel (%p1444) target = $region84
        $region83: #{ptb_lstm_forward.1} parent=43 // pred_region
          %s1448 = ssub.s32 128, 128
          %1449 = vsyncadd [#allocation18], %s1448
          %s1451 = sshll.u32 [#allocation17], 4
          %s1452 = int_to_ptr.vmem [resolvable:$true] %s1451
          %1454 = dma.vmem_to_hbm [thread:$0]  %s1452, 128, %s7, [#allocation18]
        $region84: #{ptb_lstm_forward.1} parent=43 // pred_fallthru
          _
        // Predicated region
        $region85: #{ptb_lstm_forward.1} parent=43 // pred_check
          %p1455 = pneg %p222
        $region86: #{ptb_lstm_forward.1} parent=43 // pred_check_branch
          %1457 = sbr.rel (%p1455) target = $region88
        $region87: #{ptb_lstm_forward.1} parent=43 // pred_region
          %s1459 = ssub.s32 128, 128
          %1460 = vsyncadd [#allocation18], %s1459
          %s1462 = sshll.u32 [#allocation19], 4
          %s1463 = int_to_ptr.vmem [resolvable:$true] %s1462
          %1465 = dma.vmem_to_hbm [thread:$0]  %s1463, 128, %s8, [#allocation18]
        $region88: #{ptb_lstm_forward.1} parent=43 // pred_fallthru
          _
        // Predicated region
        $region89: #{ptb_lstm_forward.1} parent=43 // pred_check
          %p1466 = pneg %p201
        $region90: #{ptb_lstm_forward.1} parent=43 // pred_check_branch
          %1468 = sbr.rel (%p1466) target = $region92
        $region91: #{ptb_lstm_forward.1} parent=43 // pred_region
          %1469 = dma.done [#allocation18], 128
        $region92: #{ptb_lstm_forward.1} parent=43 // pred_fallthru
          _
        // Predicated region
        $region93: #{ptb_lstm_forward.1} parent=43 // pred_check
          %p1470 = pneg %p222
        $region94: #{ptb_lstm_forward.1} parent=43 // pred_check_branch
          %1472 = sbr.rel (%p1470) target = $region96
        $region95: #{ptb_lstm_forward.1} parent=43 // pred_region
          %1473 = dma.done [#allocation18], 128
        $region96: #{ptb_lstm_forward.1} parent=43 // pred_fallthru
          _
      $region44: #{ptb_lstm_forward.1} parent=5 // pred_fallthru
        _
      %p1474 = scmp.le.s32.totalorder 2, %s26
      // Predicated region
      $region97: #{ptb_lstm_forward.1} parent=5 // pred_check
        %p1475 = pneg %p1474
      $region98: #{ptb_lstm_forward.1} parent=5 // pred_check_branch
        %1477 = sbr.rel (%p1475) target = $region100
      $region99: #{ptb_lstm_forward.1} parent=5 // pred_region
        %s1478 = ssub.s32 %s26, 2
        // Predicated region
        $region101: #{ptb_lstm_forward.1} parent=99 // pred_check
          %p1479 = pneg %p186
        $region102: #{ptb_lstm_forward.1} parent=99 // pred_check_branch
          %1481 = sbr.rel (%p1479) target = $region104
        $region103: #{ptb_lstm_forward.1} parent=99 // pred_region
          %s1482 = sand.u32 %s171, 1
          %s1483 = scalar_lea.sflag [#allocation6], %s1482
          %s1484 = sand.u32 %s171, 1
          %s1485 = smul.addr %s1484, 8
          %s1486 = scalar_lea.vmem [#allocation16], %s1485
          %1487 = dma.done %s1483, 128
        $region104: #{ptb_lstm_forward.1} parent=99 // pred_fallthru
          _
      $region100: #{ptb_lstm_forward.1} parent=5 // pred_fallthru
        _
    $region6: #{ptb_lstm_forward.1} parent=1 // loop_footer
      %s30 = sadd.s32 1, %s26
    $region7: #{ptb_lstm_forward.1} parent=1 // loop_footer_branch
      %25 = sbr.rel target = $region3
    $region8: #{ptb_lstm_forward.1} parent=1 // loop_exit
      _
    %1488 = vsyncpa [#allocation5], 1
    %s1489 = scalar_lea.sflag [#allocation5], 1
    %1490 = vsyncpa %s1489, 1
    %1491 = vsyncpa [#allocation12], 1
    %1492 = vsyncpa [#allocation15], 1
    %1493 = vsyncpa [#allocation6], 1
    %s1494 = scalar_lea.sflag [#allocation6], 1
    %1495 = vsyncpa %s1494, 1
    %1496 = vsyncpa [#allocation18], 1
    %1497 = vsyncpa [#allocation7], 1
    %s1498 = scalar_lea.sflag [#allocation7], 1
    %1499 = vsyncpa %s1498, 1
    %1500 = vsyncpa [#allocation9], 1

</llo_original>
